<compile_context>
chip_gen: v5e
topology: v5e:2x2
jax: 0.10.0
libtpu: 0.0.40
codegen_flags: <defaults>
</compile_context>

<pallas_src>
import jax
import jax.numpy as jnp
from jax.experimental import pallas as pl
from jax.experimental.pallas import tpu as pltpu

TM = 128  # node-row tile


def _ru(x, m=128):
    return ((x + m - 1) // m) * m


def _pad2(a, rows, cols):
    return jnp.zeros((rows, cols), a.dtype).at[: a.shape[0], : a.shape[1]].set(a)


# ----------------------------------------------------------------------------
# Kernels
# ----------------------------------------------------------------------------
def _encode_kernel(x_ref, w1_ref, w2_ref, w3_ref, b_ref, sup1_ref):
    """x = [rna | gene] row tile -> support1 = [enrna | engene] @ W_en1."""
    f32 = jnp.float32
    h2 = w1_ref.shape[1]   # width of stacked first-layer output
    m2 = w2_ref.shape[1]   # width of stacked second-layer output
    b1 = b_ref[:, 0:h2]
    b2 = b_ref[:, h2:h2 + m2]

    h = jnp.dot(x_ref[...], w1_ref[...], preferred_element_type=f32) + b1
    h = jnp.maximum(h, 0.0)
    e = jnp.dot(h.astype(jnp.bfloat16), w2_ref[...], preferred_element_type=f32) + b2
    e = jnp.maximum(e, 0.0)
    sup = jnp.dot(e.astype(jnp.bfloat16), w3_ref[...], preferred_element_type=f32)
    sup1_ref[...] = sup.astype(sup1_ref.dtype)


def _gcn1_kernel(adj_ref, sup1_ref, we2_ref, be1_ref, sup2_ref):
    """data1 = relu(adj_rows @ support1 + b_en1); support2 = data1 @ W_en2."""
    f32 = jnp.float32
    d = jnp.dot(adj_ref[...], sup1_ref[...], preferred_element_type=f32) + be1_ref[...]
    d = jnp.maximum(d, 0.0)
    s2 = jnp.dot(d.astype(jnp.bfloat16), we2_ref[...], preferred_element_type=f32)
    sup2_ref[...] = s2.astype(sup2_ref.dtype)


def _gcn2_dec_kernel(adj_ref, sup2_ref, w31_ref, w32_ref, b_ref, out_ref):
    """data2 = relu(adj_rows @ support2 + b_en2); en3 MLP; sigmoid."""
    f32 = jnp.float32
    rp = w31_ref.shape[0]
    mp = w31_ref.shape[1]
    be2 = b_ref[:, 0:rp]
    be31 = b_ref[:, rp:rp + mp]
    be32 = b_ref[:, rp + mp:rp + mp + rp]

    d = jnp.dot(adj_ref[...], sup2_ref[...], preferred_element_type=f32) + be2
    d = jnp.maximum(d, 0.0)
    d3 = jnp.dot(d.astype(jnp.bfloat16), w31_ref[...], preferred_element_type=f32) + be31
    d3 = jnp.maximum(d3, 0.0)
    d4 = jnp.dot(d3.astype(jnp.bfloat16), w32_ref[...], preferred_element_type=f32) + be32
    out_ref[...] = jax.nn.sigmoid(d4)


# ----------------------------------------------------------------------------
# Parameter packing: pad to 128-lane-dense shapes, cast matmul weights to bf16,
# stack the two encoder branches block-diagonally, concat biases.
# ----------------------------------------------------------------------------
def pack_params(p, rna_dim, gene_dim, mid_dim, second_dim):
    f32, bf16 = jnp.float32, jnp.bfloat16
    R, G = _ru(rna_dim), _ru(gene_dim)
    H, M, S = _ru(2 * mid_dim), _ru(mid_dim), _ru(second_dim)

    # stacked encoder layer 1: [rna | gene] @ blockdiag(wr1, wg1) = [h_rna | h_gene]
    w1 = jnp.zeros((R + G, 2 * H), f32)
    w1 = w1.at[:rna_dim, :2 * mid_dim].set(p["wr1"])
    w1 = w1.at[R:R + gene_dim, H:H + 2 * mid_dim].set(p["wg1"])
    # stacked encoder layer 2: [h_rna | h_gene] @ blockdiag(wr2, wg2) = [enrna | engene]
    w2 = jnp.zeros((2 * H, 2 * M), f32)
    w2 = w2.at[:2 * mid_dim, :mid_dim].set(p["wr2"])
    w2 = w2.at[H:H + 2 * mid_dim, M:M + mid_dim].set(p["wg2"])
    # en1 GCN weight: top half multiplies enrna, bottom half engene (== concat @ we1)
    w3 = jnp.zeros((2 * M, S), f32)
    w3 = w3.at[:mid_dim, :second_dim].set(p["we1"][:mid_dim])
    w3 = w3.at[M:M + mid_dim, :second_dim].set(p["we1"][mid_dim:])
    # packed encoder biases: [br1 | bg1 | br2 | bg2] in padded slots
    b_enc = jnp.zeros((1, 2 * H + 2 * M), f32)
    b_enc = b_enc.at[0, :2 * mid_dim].set(p["br1"])
    b_enc = b_enc.at[0, H:H + 2 * mid_dim].set(p["bg1"])
    b_enc = b_enc.at[0, 2 * H:2 * H + mid_dim].set(p["br2"])
    b_enc = b_enc.at[0, 2 * H + M:2 * H + M + mid_dim].set(p["bg2"])

    we2 = _pad2(p["we2"], S, R)
    be1 = jnp.zeros((1, S), f32).at[0, :second_dim].set(p["be1"])

    we31 = _pad2(p["we31"], R, M)
    we32 = _pad2(p["we32"], M, R)
    b_dec = jnp.zeros((1, 2 * R + M), f32)
    b_dec = b_dec.at[0, :rna_dim].set(p["be2"])
    b_dec = b_dec.at[0, R:R + mid_dim].set(p["be31"])
    b_dec = b_dec.at[0, R + M:R + M + rna_dim].set(p["be32"])

    return dict(
        w1=w1.astype(bf16), w2=w2.astype(bf16), w3=w3.astype(bf16), b_enc=b_enc,
        we2=we2.astype(bf16), be1=be1,
        we31=we31.astype(bf16), we32=we32.astype(bf16), b_dec=b_dec,
    )


# ----------------------------------------------------------------------------
# Forward wrapper
# ----------------------------------------------------------------------------
def d_forward(rna, gene, adj, packed):
    n, rna_dim = rna.shape
    gene_dim = gene.shape[1]
    R, G = _ru(rna_dim), _ru(gene_dim)
    S = packed["we2"].shape[0]
    M = packed["we31"].shape[1]
    h2 = packed["w1"].shape[1]
    m2 = packed["w2"].shape[1]
    n_pad = _ru(n, TM)
    bf16 = jnp.bfloat16

    # Lane-dense padded inputs (zero padding is exact: padded adj cols are zero,
    # so padded node rows never contribute; padded feature cols propagate as zeros).
    x = jnp.zeros((n_pad, R + G), bf16)
    x = x.at[:n, :rna_dim].set(rna.astype(bf16))
    x = x.at[:n, R:R + gene_dim].set(gene.astype(bf16))
    adj_p = jnp.zeros((n_pad, n_pad), bf16).at[:n, :n].set(adj.astype(bf16))

    grid = (n_pad // TM,)
    cparams = pltpu.CompilerParams(
        dimension_semantics=("parallel",),
        vmem_limit_bytes=32 * 1024 * 1024,
    )

    # 1) encoders + en1 support (row-tiled; weights/biases resident)
    sup1 = pl.pallas_call(
        _encode_kernel,
        out_shape=jax.ShapeDtypeStruct((n_pad, S), bf16),
        grid=grid,
        in_specs=[
            pl.BlockSpec((TM, R + G), lambda i: (i, 0)),
            pl.BlockSpec((R + G, h2), lambda i: (0, 0)),
            pl.BlockSpec((h2, m2), lambda i: (0, 0)),
            pl.BlockSpec((m2, S), lambda i: (0, 0)),
            pl.BlockSpec((1, h2 + m2), lambda i: (0, 0)),
        ],
        out_specs=pl.BlockSpec((TM, S), lambda i: (i, 0)),
        compiler_params=cparams,
    )(x, packed["w1"], packed["w2"], packed["w3"], packed["b_enc"])

    # 2) GCN en1 + en2 support (adj row tile, support1 resident)
    sup2 = pl.pallas_call(
        _gcn1_kernel,
        out_shape=jax.ShapeDtypeStruct((n_pad, R), bf16),
        grid=grid,
        in_specs=[
            pl.BlockSpec((TM, n_pad), lambda i: (i, 0)),
            pl.BlockSpec((n_pad, S), lambda i: (0, 0)),
            pl.BlockSpec((S, R), lambda i: (0, 0)),
            pl.BlockSpec((1, S), lambda i: (0, 0)),
        ],
        out_specs=pl.BlockSpec((TM, R), lambda i: (i, 0)),
        compiler_params=cparams,
    )(adj_p, sup1, packed["we2"], packed["be1"])

    # 3) GCN en2 + decoder MLP + sigmoid
    out_p = pl.pallas_call(
        _gcn2_dec_kernel,
        out_shape=jax.ShapeDtypeStruct((n_pad, R), jnp.float32),
        grid=grid,
        in_specs=[
            pl.BlockSpec((TM, n_pad), lambda i: (i, 0)),
            pl.BlockSpec((n_pad, R), lambda i: (0, 0)),
            pl.BlockSpec((R, M), lambda i: (0, 0)),
            pl.BlockSpec((M, R), lambda i: (0, 0)),
            pl.BlockSpec((1, 2 * R + M), lambda i: (0, 0)),
        ],
        out_specs=pl.BlockSpec((TM, R), lambda i: (i, 0)),
        compiler_params=cparams,
    )(adj_p, sup2, packed["we31"], packed["we32"], packed["b_dec"])

    return out_p[:n, :rna_dim]


# ----------------------------------------------------------------------------
# Deterministic raw parameters (PyTorch layout: weights stored as (in, out))
# ----------------------------------------------------------------------------
def init_params(key, rna_dim, gene_dim, mid_dim, second_dim):
    def kaiming(k, shape):
        bound = (6.0 / shape[0]) ** 0.5
        return jax.random.uniform(k, shape, jnp.float32, -bound, bound)

    def small_bias(k, n):
        return jax.random.uniform(k, (n,), jnp.float32, -0.1, 0.1)

    ks = jax.random.split(key, 16)
    return {
        "wr1": kaiming(ks[0], (rna_dim, 2 * mid_dim)), "br1": small_bias(ks[1], 2 * mid_dim),
        "wr2": kaiming(ks[2], (2 * mid_dim, mid_dim)), "br2": small_bias(ks[3], mid_dim),
        "wg1": kaiming(ks[4], (gene_dim, 2 * mid_dim)), "bg1": small_bias(ks[5], 2 * mid_dim),
        "wg2": kaiming(ks[6], (2 * mid_dim, mid_dim)), "bg2": small_bias(ks[7], mid_dim),
        "we1": kaiming(ks[8], (2 * mid_dim, second_dim)), "be1": jnp.zeros((second_dim,), jnp.float32),
        "we2": kaiming(ks[9], (second_dim, rna_dim)), "be2": jnp.zeros((rna_dim,), jnp.float32),
        "we31": kaiming(ks[10], (rna_dim, mid_dim)), "be31": small_bias(ks[11], mid_dim),
        "we32": kaiming(ks[12], (mid_dim, rna_dim)), "be32": small_bias(ks[13], rna_dim),
    }


# ----------------------------------------------------------------------------
# References: exact f32 (mirrors PyTorch) and bf16-matmul mirror (tight check)
# ----------------------------------------------------------------------------
def d_forward_ref(rna, gene, adj, p):
    relu = lambda x: jnp.maximum(x, 0.0)
    enrna = relu(relu(rna @ p["wr1"] + p["br1"]) @ p["wr2"] + p["br2"])
    engene = relu(relu(gene @ p["wg1"] + p["bg1"]) @ p["wg2"] + p["bg2"])
    data = jnp.concatenate([enrna, engene], axis=-1)
    data = relu(adj @ (data @ p["we1"]) + p["be1"])
    data = relu(adj @ (data @ p["we2"]) + p["be2"])
    data = relu(data @ p["we31"] + p["be31"]) @ p["we32"] + p["be32"]
    return jax.nn.sigmoid(data)


def d_forward_ref_bf16(rna, gene, adj, p):
    f32, bf = jnp.float32, (lambda a: a.astype(jnp.bfloat16))
    relu = lambda x: jnp.maximum(x, 0.0)
    dot = lambda a, b: jnp.dot(bf(a), bf(b), preferred_element_type=f32)
    enrna = relu(dot(relu(dot(rna, p["wr1"]) + p["br1"]), p["wr2"]) + p["br2"])
    engene = relu(dot(relu(dot(gene, p["wg1"]) + p["bg1"]), p["wg2"]) + p["bg2"])
    data = jnp.concatenate([enrna, engene], axis=-1)
    data = relu(dot(adj, dot(data, p["we1"])) + p["be1"])
    data = relu(dot(adj, dot(data, p["we2"])) + p["be2"])
    data = dot(relu(dot(data, p["we31"]) + p["be31"]), p["we32"]) + p["be32"]
    return jax.nn.sigmoid(data)


if __name__ == "__main__":
    n_nodes, rna_dim, gene_dim, mid_dim, second_dim = 8, 16, 24, 32, 16

    key = jax.random.PRNGKey(0)
    k_rna, k_gene, k_adj, k_params = jax.random.split(key, 4)
    rna = jax.random.normal(k_rna, (n_nodes, rna_dim), jnp.float32)
    gene = jax.random.normal(k_gene, (n_nodes, gene_dim), jnp.float32)
    adj = jax.random.uniform(k_adj, (n_nodes, n_nodes), jnp.float32)

    raw = init_params(k_params, rna_dim, gene_dim, mid_dim, second_dim)
    packed = pack_params(raw, rna_dim, gene_dim, mid_dim, second_dim)

    fwd = jax.jit(d_forward)
    out = jax.block_until_ready(fwd(rna, gene, adj, packed))
    assert out.shape == (n_nodes, rna_dim)

    ref_bf16 = d_forward_ref_bf16(rna, gene, adj, raw)   # mirrors kernel precision
    ref_f32 = d_forward_ref(rna, gene, adj, raw)         # exact module semantics
    err_tight = float(jnp.max(jnp.abs(out - ref_bf16)))
    err_loose = float(jnp.max(jnp.abs(out - ref_f32)))
    assert err_tight < 5e-3, f"mismatch vs bf16 reference: {err_tight}"
    assert err_loose < 5e-2, f"mismatch vs f32 reference: {err_loose}"

    print("KERNEL_OK")
</pallas_src>

<mosaic_0001>
module attributes {stable_mosaic.version = 11 : i64} {
  func.func @_encode_kernel(%arg0: i32, %arg1: memref<128x256xbf16, #tpu.memory_space<vmem>>, %arg2: memref<256x256xbf16, #tpu.memory_space<vmem>>, %arg3: memref<256x256xbf16, #tpu.memory_space<vmem>>, %arg4: memref<256x128xbf16, #tpu.memory_space<vmem>>, %arg5: memref<1x512xf32, #tpu.memory_space<vmem>>, %arg6: memref<128x128xbf16, #tpu.memory_space<vmem>>) attributes {dimension_semantics = [#tpu.dimension_semantics<parallel>], iteration_bounds = array<i64: 1>, scalar_prefetch = 0 : i64, scratch_operands = 0 : i64, tpu.core_type = #tpu.core_type<tc>, window_params = [{transform_indices = @transform_0, window_bounds = array<i64: 128, 256>}, {pipeline_mode = #tpu.pipeline_mode<synchronous>, transform_indices = @transform_1, window_bounds = array<i64: 256, 256>}, {pipeline_mode = #tpu.pipeline_mode<synchronous>, transform_indices = @transform_2, window_bounds = array<i64: 256, 256>}, {pipeline_mode = #tpu.pipeline_mode<synchronous>, transform_indices = @transform_3, window_bounds = array<i64: 256, 128>}, {pipeline_mode = #tpu.pipeline_mode<synchronous>, transform_indices = @transform_4, window_bounds = array<i64: 1, 512>}, {transform_indices = @transform_5, window_bounds = array<i64: 128, 128>}]} {
    %c0 = arith.constant 0 : index
    %c0_0 = arith.constant 0 : index
    %0 = vector.load %arg5[%c0, %c0_0] : memref<1x512xf32, #tpu.memory_space<vmem>>, vector<1x256xf32>
    %c0_1 = arith.constant 0 : index
    %c256 = arith.constant 256 : index
    %1 = vector.load %arg5[%c0_1, %c256] : memref<1x512xf32, #tpu.memory_space<vmem>>, vector<1x256xf32>
    %c0_2 = arith.constant 0 : index
    %c0_3 = arith.constant 0 : index
    %2 = vector.load %arg1[%c0_2, %c0_3] : memref<128x256xbf16, #tpu.memory_space<vmem>>, vector<128x256xbf16>
    %c0_4 = arith.constant 0 : index
    %c0_5 = arith.constant 0 : index
    %3 = vector.load %arg2[%c0_4, %c0_5] : memref<256x256xbf16, #tpu.memory_space<vmem>>, vector<256x256xbf16>
    %cst = arith.constant dense<0.000000e+00> : vector<128x256xf32>
    %4 = tpu.matmul %2, %3, %cst {dimension_numbers = #tpu.dot_dimension_numbers<[1], [0], [0], [1], [0, 0, 1, 1], [], []>} : vector<128x256xbf16>, vector<256x256xbf16>, vector<128x256xf32> -> vector<128x256xf32>
    %5 = vector.broadcast %0 : vector<1x256xf32> to vector<128x256xf32>
    %6 = arith.addf %4, %5 : vector<128x256xf32>
    %cst_6 = arith.constant 0.000000e+00 : f32
    %7 = vector.broadcast %cst_6 : f32 to vector<128x256xf32>
    %8 = arith.maximumf %6, %7 : vector<128x256xf32>
    %9 = arith.truncf %8 : vector<128x256xf32> to vector<128x256xbf16>
    %c0_7 = arith.constant 0 : index
    %c0_8 = arith.constant 0 : index
    %10 = vector.load %arg3[%c0_7, %c0_8] : memref<256x256xbf16, #tpu.memory_space<vmem>>, vector<256x256xbf16>
    %cst_9 = arith.constant dense<0.000000e+00> : vector<128x256xf32>
    %11 = tpu.matmul %9, %10, %cst_9 {dimension_numbers = #tpu.dot_dimension_numbers<[1], [0], [0], [1], [0, 0, 1, 1], [], []>} : vector<128x256xbf16>, vector<256x256xbf16>, vector<128x256xf32> -> vector<128x256xf32>
    %12 = vector.broadcast %1 : vector<1x256xf32> to vector<128x256xf32>
    %13 = arith.addf %11, %12 : vector<128x256xf32>
    %cst_10 = arith.constant 0.000000e+00 : f32
    %14 = vector.broadcast %cst_10 : f32 to vector<128x256xf32>
    %15 = arith.maximumf %13, %14 : vector<128x256xf32>
    %16 = arith.truncf %15 : vector<128x256xf32> to vector<128x256xbf16>
    %c0_11 = arith.constant 0 : index
    %c0_12 = arith.constant 0 : index
    %17 = vector.load %arg4[%c0_11, %c0_12] : memref<256x128xbf16, #tpu.memory_space<vmem>>, vector<256x128xbf16>
    %cst_13 = arith.constant dense<0.000000e+00> : vector<128x128xf32>
    %18 = tpu.matmul %16, %17, %cst_13 {dimension_numbers = #tpu.dot_dimension_numbers<[1], [0], [0], [1], [0, 0, 1, 1], [], []>} : vector<128x256xbf16>, vector<256x128xbf16>, vector<128x128xf32> -> vector<128x128xf32>
    %19 = arith.truncf %18 : vector<128x128xf32> to vector<128x128xbf16>
    %c0_14 = arith.constant 0 : index
    %c0_15 = arith.constant 0 : index
    %20 = vector.load %arg6[%c0_14, %c0_15] : memref<128x128xbf16, #tpu.memory_space<vmem>>, vector<128x128xbf16>
    tpu.vector_store %arg6[%c0_14, %c0_15], %19 {strides = array<i32>} : memref<128x128xbf16, #tpu.memory_space<vmem>>, vector<128x128xbf16>,
    return
  }
  func.func @transform_0(%arg0: i32) -> (i32, i32) {
    %c0_i32 = arith.constant 0 : i32
    %c0_i32_0 = arith.constant 0 : i32
    return %arg0, %c0_i32 : i32, i32
  }
  func.func @transform_1(%arg0: i32) -> (i32, i32) {
    %c0_i32 = arith.constant 0 : i32
    %c0_i32_0 = arith.constant 0 : i32
    %c0_i32_1 = arith.constant 0 : i32
    return %c0_i32, %c0_i32_0 : i32, i32
  }
  func.func @transform_2(%arg0: i32) -> (i32, i32) {
    %c0_i32 = arith.constant 0 : i32
    %c0_i32_0 = arith.constant 0 : i32
    %c0_i32_1 = arith.constant 0 : i32
    return %c0_i32, %c0_i32_0 : i32, i32
  }
  func.func @transform_3(%arg0: i32) -> (i32, i32) {
    %c0_i32 = arith.constant 0 : i32
    %c0_i32_0 = arith.constant 0 : i32
    %c0_i32_1 = arith.constant 0 : i32
    return %c0_i32, %c0_i32_0 : i32, i32
  }
  func.func @transform_4(%arg0: i32) -> (i32, i32) {
    %c0_i32 = arith.constant 0 : i32
    %c0_i32_0 = arith.constant 0 : i32
    %c0_i32_1 = arith.constant 0 : i32
    return %c0_i32, %c0_i32_0 : i32, i32
  }
  func.func @transform_5(%arg0: i32) -> (i32, i32) {
    %c0_i32 = arith.constant 0 : i32
    %c0_i32_0 = arith.constant 0 : i32
    return %arg0, %c0_i32 : i32, i32
  }
}

module attributes {stable_mosaic.version = 11 : i64} {
  func.func @_gcn2_dec_kernel(%arg0: i32, %arg1: memref<128x128xbf16, #tpu.memory_space<vmem>>, %arg2: memref<128x128xbf16, #tpu.memory_space<vmem>>, %arg3: memref<128x128xbf16, #tpu.memory_space<vmem>>, %arg4: memref<128x128xbf16, #tpu.memory_space<vmem>>, %arg5: memref<1x384xf32, #tpu.memory_space<vmem>>, %arg6: memref<128x128xf32, #tpu.memory_space<vmem>>) attributes {dimension_semantics = [#tpu.dimension_semantics<parallel>], iteration_bounds = array<i64: 1>, scalar_prefetch = 0 : i64, scratch_operands = 0 : i64, tpu.core_type = #tpu.core_type<tc>, window_params = [{transform_indices = @transform_0, window_bounds = array<i64: 128, 128>}, {pipeline_mode = #tpu.pipeline_mode<synchronous>, transform_indices = @transform_1, window_bounds = array<i64: 128, 128>}, {pipeline_mode = #tpu.pipeline_mode<synchronous>, transform_indices = @transform_2, window_bounds = array<i64: 128, 128>}, {pipeline_mode = #tpu.pipeline_mode<synchronous>, transform_indices = @transform_3, window_bounds = array<i64: 128, 128>}, {pipeline_mode = #tpu.pipeline_mode<synchronous>, transform_indices = @transform_4, window_bounds = array<i64: 1, 384>}, {transform_indices = @transform_5, window_bounds = array<i64: 128, 128>}]} {
    %c0 = arith.constant 0 : index
    %c0_0 = arith.constant 0 : index
    %0 = vector.load %arg5[%c0, %c0_0] : memref<1x384xf32, #tpu.memory_space<vmem>>, vector<1x128xf32>
    %c0_1 = arith.constant 0 : index
    %c128 = arith.constant 128 : index
    %1 = vector.load %arg5[%c0_1, %c128] : memref<1x384xf32, #tpu.memory_space<vmem>>, vector<1x128xf32>
    %c0_2 = arith.constant 0 : index
    %c256 = arith.constant 256 : index
    %2 = vector.load %arg5[%c0_2, %c256] : memref<1x384xf32, #tpu.memory_space<vmem>>, vector<1x128xf32>
    %c0_3 = arith.constant 0 : index
    %c0_4 = arith.constant 0 : index
    %3 = vector.load %arg1[%c0_3, %c0_4] : memref<128x128xbf16, #tpu.memory_space<vmem>>, vector<128x128xbf16>
    %c0_5 = arith.constant 0 : index
    %c0_6 = arith.constant 0 : index
    %4 = vector.load %arg2[%c0_5, %c0_6] : memref<128x128xbf16, #tpu.memory_space<vmem>>, vector<128x128xbf16>
    %cst = arith.constant dense<0.000000e+00> : vector<128x128xf32>
    %5 = tpu.matmul %3, %4, %cst {dimension_numbers = #tpu.dot_dimension_numbers<[1], [0], [0], [1], [0, 0, 1, 1], [], []>} : vector<128x128xbf16>, vector<128x128xbf16>, vector<128x128xf32> -> vector<128x128xf32>
    %6 = vector.broadcast %0 : vector<1x128xf32> to vector<128x128xf32>
    %7 = arith.addf %5, %6 : vector<128x128xf32>
    %cst_7 = arith.constant 0.000000e+00 : f32
    %8 = vector.broadcast %cst_7 : f32 to vector<128x128xf32>
    %9 = arith.maximumf %7, %8 : vector<128x128xf32>
    %10 = arith.truncf %9 : vector<128x128xf32> to vector<128x128xbf16>
    %c0_8 = arith.constant 0 : index
    %c0_9 = arith.constant 0 : index
    %11 = vector.load %arg3[%c0_8, %c0_9] : memref<128x128xbf16, #tpu.memory_space<vmem>>, vector<128x128xbf16>
    %cst_10 = arith.constant dense<0.000000e+00> : vector<128x128xf32>
    %12 = tpu.matmul %10, %11, %cst_10 {dimension_numbers = #tpu.dot_dimension_numbers<[1], [0], [0], [1], [0, 0, 1, 1], [], []>} : vector<128x128xbf16>, vector<128x128xbf16>, vector<128x128xf32> -> vector<128x128xf32>
    %13 = vector.broadcast %1 : vector<1x128xf32> to vector<128x128xf32>
    %14 = arith.addf %12, %13 : vector<128x128xf32>
    %cst_11 = arith.constant 0.000000e+00 : f32
    %15 = vector.broadcast %cst_11 : f32 to vector<128x128xf32>
    %16 = arith.maximumf %14, %15 : vector<128x128xf32>
    %17 = arith.truncf %16 : vector<128x128xf32> to vector<128x128xbf16>
    %c0_12 = arith.constant 0 : index
    %c0_13 = arith.constant 0 : index
    %18 = vector.load %arg4[%c0_12, %c0_13] : memref<128x128xbf16, #tpu.memory_space<vmem>>, vector<128x128xbf16>
    %cst_14 = arith.constant dense<0.000000e+00> : vector<128x128xf32>
    %19 = tpu.matmul %17, %18, %cst_14 {dimension_numbers = #tpu.dot_dimension_numbers<[1], [0], [0], [1], [0, 0, 1, 1], [], []>} : vector<128x128xbf16>, vector<128x128xbf16>, vector<128x128xf32> -> vector<128x128xf32>
    %20 = vector.broadcast %2 : vector<1x128xf32> to vector<128x128xf32>
    %21 = arith.addf %19, %20 : vector<128x128xf32>
    %22 = arith.negf %21 : vector<128x128xf32>
    %23 = math.exp %22 : vector<128x128xf32>
    %cst_15 = arith.constant 1.000000e+00 : f32
    %24 = vector.broadcast %cst_15 : f32 to vector<128x128xf32>
    %25 = arith.addf %24, %23 : vector<128x128xf32>
    %26 = arith.divf %24, %25 : vector<128x128xf32>
    %c0_16 = arith.constant 0 : index
    %c0_17 = arith.constant 0 : index
    %27 = vector.load %arg6[%c0_16, %c0_17] : memref<128x128xf32, #tpu.memory_space<vmem>>, vector<128x128xf32>
    tpu.vector_store %arg6[%c0_16, %c0_17], %26 {strides = array<i32>} : memref<128x128xf32, #tpu.memory_space<vmem>>, vector<128x128xf32>,
    return
  }
  func.func @transform_0(%arg0: i32) -> (i32, i32) {
    %c0_i32 = arith.constant 0 : i32
    %c0_i32_0 = arith.constant 0 : i32
    return %arg0, %c0_i32 : i32, i32
  }
  func.func @transform_1(%arg0: i32) -> (i32, i32) {
    %c0_i32 = arith.constant 0 : i32
    %c0_i32_0 = arith.constant 0 : i32
    %c0_i32_1 = arith.constant 0 : i32
    return %c0_i32, %c0_i32_0 : i32, i32
  }
  func.func @transform_2(%arg0: i32) -> (i32, i32) {
    %c0_i32 = arith.constant 0 : i32
    %c0_i32_0 = arith.constant 0 : i32
    %c0_i32_1 = arith.constant 0 : i32
    return %c0_i32, %c0_i32_0 : i32, i32
  }
  func.func @transform_3(%arg0: i32) -> (i32, i32) {
    %c0_i32 = arith.constant 0 : i32
    %c0_i32_0 = arith.constant 0 : i32
    %c0_i32_1 = arith.constant 0 : i32
    return %c0_i32, %c0_i32_0 : i32, i32
  }
  func.func @transform_4(%arg0: i32) -> (i32, i32) {
    %c0_i32 = arith.constant 0 : i32
    %c0_i32_0 = arith.constant 0 : i32
    %c0_i32_1 = arith.constant 0 : i32
    return %c0_i32, %c0_i32_0 : i32, i32
  }
  func.func @transform_5(%arg0: i32) -> (i32, i32) {
    %c0_i32 = arith.constant 0 : i32
    %c0_i32_0 = arith.constant 0 : i32
    return %arg0, %c0_i32 : i32, i32
  }
}

module attributes {stable_mosaic.version = 11 : i64} {
  func.func @_gcn1_kernel(%arg0: i32, %arg1: memref<128x128xbf16, #tpu.memory_space<vmem>>, %arg2: memref<128x128xbf16, #tpu.memory_space<vmem>>, %arg3: memref<128x128xbf16, #tpu.memory_space<vmem>>, %arg4: memref<1x128xf32, #tpu.memory_space<vmem>>, %arg5: memref<128x128xbf16, #tpu.memory_space<vmem>>) attributes {dimension_semantics = [#tpu.dimension_semantics<parallel>], iteration_bounds = array<i64: 1>, scalar_prefetch = 0 : i64, scratch_operands = 0 : i64, tpu.core_type = #tpu.core_type<tc>, window_params = [{transform_indices = @transform_0, window_bounds = array<i64: 128, 128>}, {pipeline_mode = #tpu.pipeline_mode<synchronous>, transform_indices = @transform_1, window_bounds = array<i64: 128, 128>}, {pipeline_mode = #tpu.pipeline_mode<synchronous>, transform_indices = @transform_2, window_bounds = array<i64: 128, 128>}, {pipeline_mode = #tpu.pipeline_mode<synchronous>, transform_indices = @transform_3, window_bounds = array<i64: 1, 128>}, {transform_indices = @transform_4, window_bounds = array<i64: 128, 128>}]} {
    %c0 = arith.constant 0 : index
    %c0_0 = arith.constant 0 : index
    %0 = vector.load %arg1[%c0, %c0_0] : memref<128x128xbf16, #tpu.memory_space<vmem>>, vector<128x128xbf16>
    %c0_1 = arith.constant 0 : index
    %c0_2 = arith.constant 0 : index
    %1 = vector.load %arg2[%c0_1, %c0_2] : memref<128x128xbf16, #tpu.memory_space<vmem>>, vector<128x128xbf16>
    %cst = arith.constant dense<0.000000e+00> : vector<128x128xf32>
    %2 = tpu.matmul %0, %1, %cst {dimension_numbers = #tpu.dot_dimension_numbers<[1], [0], [0], [1], [0, 0, 1, 1], [], []>} : vector<128x128xbf16>, vector<128x128xbf16>, vector<128x128xf32> -> vector<128x128xf32>
    %c0_3 = arith.constant 0 : index
    %c0_4 = arith.constant 0 : index
    %3 = vector.load %arg4[%c0_3, %c0_4] : memref<1x128xf32, #tpu.memory_space<vmem>>, vector<1x128xf32>
    %4 = vector.broadcast %3 : vector<1x128xf32> to vector<128x128xf32>
    %5 = arith.addf %2, %4 : vector<128x128xf32>
    %cst_5 = arith.constant 0.000000e+00 : f32
    %6 = vector.broadcast %cst_5 : f32 to vector<128x128xf32>
    %7 = arith.maximumf %5, %6 : vector<128x128xf32>
    %8 = arith.truncf %7 : vector<128x128xf32> to vector<128x128xbf16>
    %c0_6 = arith.constant 0 : index
    %c0_7 = arith.constant 0 : index
    %9 = vector.load %arg3[%c0_6, %c0_7] : memref<128x128xbf16, #tpu.memory_space<vmem>>, vector<128x128xbf16>
    %cst_8 = arith.constant dense<0.000000e+00> : vector<128x128xf32>
    %10 = tpu.matmul %8, %9, %cst_8 {dimension_numbers = #tpu.dot_dimension_numbers<[1], [0], [0], [1], [0, 0, 1, 1], [], []>} : vector<128x128xbf16>, vector<128x128xbf16>, vector<128x128xf32> -> vector<128x128xf32>
    %11 = arith.truncf %10 : vector<128x128xf32> to vector<128x128xbf16>
    %c0_9 = arith.constant 0 : index
    %c0_10 = arith.constant 0 : index
    %12 = vector.load %arg5[%c0_9, %c0_10] : memref<128x128xbf16, #tpu.memory_space<vmem>>, vector<128x128xbf16>
    tpu.vector_store %arg5[%c0_9, %c0_10], %11 {strides = array<i32>} : memref<128x128xbf16, #tpu.memory_space<vmem>>, vector<128x128xbf16>,
    return
  }
  func.func @transform_0(%arg0: i32) -> (i32, i32) {
    %c0_i32 = arith.constant 0 : i32
    %c0_i32_0 = arith.constant 0 : i32
    return %arg0, %c0_i32 : i32, i32
  }
  func.func @transform_1(%arg0: i32) -> (i32, i32) {
    %c0_i32 = arith.constant 0 : i32
    %c0_i32_0 = arith.constant 0 : i32
    %c0_i32_1 = arith.constant 0 : i32
    return %c0_i32, %c0_i32_0 : i32, i32
  }
  func.func @transform_2(%arg0: i32) -> (i32, i32) {
    %c0_i32 = arith.constant 0 : i32
    %c0_i32_0 = arith.constant 0 : i32
    %c0_i32_1 = arith.constant 0 : i32
    return %c0_i32, %c0_i32_0 : i32, i32
  }
  func.func @transform_3(%arg0: i32) -> (i32, i32) {
    %c0_i32 = arith.constant 0 : i32
    %c0_i32_0 = arith.constant 0 : i32
    %c0_i32_1 = arith.constant 0 : i32
    return %c0_i32, %c0_i32_0 : i32, i32
  }
  func.func @transform_4(%arg0: i32) -> (i32, i32) {
    %c0_i32 = arith.constant 0 : i32
    %c0_i32_0 = arith.constant 0 : i32
    return %arg0, %c0_i32 : i32, i32
  }
}

</mosaic_0001>

<llo_original>
// kernel: d_forward.4
$region0: #{d_forward.4}
  #allocation0 [shape = 'u32[]', space=smem, size = 0x4, offset = 0x4, fixed_abs, tag = 'smem constant byte address 0x4 - core index']
  #allocation1 [shape = 'u32[72,128]{1,0:T(1,128)}', space=vmem, size = 0x9000, scoped, tag = 'internal scratch']
  %s0 = inlined_call_operand.vmem [shape: bf16[128,128], index: 0, kind: input, shape index: {}]
  %s1 = inlined_call_operand.vmem [shape: bf16[128,128], index: 1, kind: input, shape index: {}]
  %s2 = inlined_call_operand.vmem [shape: bf16[128,128], index: 2, kind: input, shape index: {}]
  %s3 = inlined_call_operand.vmem [shape: f32[1,128], index: 3, kind: input, shape index: {}]
  %s4 = inlined_call_operand.vmem [shape: bf16[128,128], index: 4, kind: output, shape index: {}]
  %s5 = sld [smem:[#allocation0]]
  $region26: #{d_forward.4} parent=0
    _
  %s7 = ssub.s32 1, %s5
  %s8 = scalar_select 0, %s7, %s5
  // Predicated region
  $region2: #{d_forward.4} parent=0 // pred_check
    _
  $region3: #{d_forward.4} parent=0 // pred_check_branch
    %10 = sbr.rel (0) target = $region5
  $region4: #{d_forward.4} parent=0 // pred_region
    _
  $region5: #{d_forward.4} parent=0 // pred_fallthru
    _
  // Predicated region
  $region6: #{d_forward.4} parent=0 // pred_check
    _
  $region7: #{d_forward.4} parent=0 // pred_check_branch
    %12 = sbr.rel (0) target = $region9
  $region8: #{d_forward.4} parent=0 // pred_region
    _
  $region9: #{d_forward.4} parent=0 // pred_fallthru
    _
  // Predicated region
  $region10: #{d_forward.4} parent=0 // pred_check
    _
  $region11: #{d_forward.4} parent=0 // pred_check_branch
    %14 = sbr.rel (0) target = $region13
  $region12: #{d_forward.4} parent=0 // pred_region
    _
  $region13: #{d_forward.4} parent=0 // pred_fallthru
    _
  // Predicated region
  $region14: #{d_forward.4} parent=0 // pred_check
    _
  $region15: #{d_forward.4} parent=0 // pred_check_branch
    %16 = sbr.rel (0) target = $region17
  $region16: #{d_forward.4} parent=0 // pred_region
    _
  $region17: #{d_forward.4} parent=0 // pred_fallthru
    _
  %v17 = vld [vmem:[%s0] sm:$0xf]
  %v18 = vld [vmem:[%s0 + $0x4] sm:$0xf]
  %v19 = vld [vmem:[%s0 + $0x8] sm:$0xf]
  %v20 = vld [vmem:[%s0 + $0xc] sm:$0xf]
  %v21 = vld [vmem:[%s0 + $0x10] sm:$0xf]
  %v22 = vld [vmem:[%s0 + $0x14] sm:$0xf]
  %v23 = vld [vmem:[%s0 + $0x18] sm:$0xf]
  %v24 = vld [vmem:[%s0 + $0x1c] sm:$0xf]
  %v25 = vld [vmem:[%s0 + $0x20] sm:$0xf]
  %v26 = vld [vmem:[%s0 + $0x24] sm:$0xf]
  %v27 = vld [vmem:[%s0 + $0x28] sm:$0xf]
  %v28 = vld [vmem:[%s0 + $0x2c] sm:$0xf]
  %v29 = vld [vmem:[%s0 + $0x30] sm:$0xf]
  %v30 = vld [vmem:[%s0 + $0x34] sm:$0xf]
  %v31 = vld [vmem:[%s0 + $0x38] sm:$0xf]
  %v32 = vld [vmem:[%s0 + $0x3c] sm:$0xf]
  %v33 = vld [vmem:[%s1] sm:$0xf]
  %v34 = vld [vmem:[%s1 + $0x4] sm:$0xf]
  %v35 = vld [vmem:[%s1 + $0x8] sm:$0xf]
  %v36 = vld [vmem:[%s1 + $0xc] sm:$0xf]
  %v37 = vld [vmem:[%s1 + $0x10] sm:$0xf]
  %v38 = vld [vmem:[%s1 + $0x14] sm:$0xf]
  %v39 = vld [vmem:[%s1 + $0x18] sm:$0xf]
  %v40 = vld [vmem:[%s1 + $0x1c] sm:$0xf]
  %v41 = vld [vmem:[%s1 + $0x20] sm:$0xf]
  %v42 = vld [vmem:[%s1 + $0x24] sm:$0xf]
  %v43 = vld [vmem:[%s1 + $0x28] sm:$0xf]
  %v44 = vld [vmem:[%s1 + $0x2c] sm:$0xf]
  %v45 = vld [vmem:[%s1 + $0x30] sm:$0xf]
  %v46 = vld [vmem:[%s1 + $0x34] sm:$0xf]
  %v47 = vld [vmem:[%s1 + $0x38] sm:$0xf]
  %v48 = vld [vmem:[%s1 + $0x3c] sm:$0xf]
  %v49 = vld [vmem:[%s3] sm:$0x1]
  %v51 = vperm.slane %v49, 0
  %v69 = vunpack.c.l.b16 %v17
  %v70 = vunpack.c.l.b16 %v18
  %v71 = vunpack.c.l.b16 %v19
  %v72 = vunpack.c.l.b16 %v20
  %v73 = vunpack.c.l.b16 %v21
  %v74 = vunpack.c.l.b16 %v22
  %v75 = vunpack.c.l.b16 %v23
  %v76 = vunpack.c.l.b16 %v24
  %v77 = vunpack.c.l.b16 %v25
  %v78 = vunpack.c.l.b16 %v26
  %v79 = vunpack.c.l.b16 %v27
  %v80 = vunpack.c.l.b16 %v28
  %v81 = vunpack.c.l.b16 %v29
  %v82 = vunpack.c.l.b16 %v30
  %v83 = vunpack.c.l.b16 %v31
  %v84 = vunpack.c.l.b16 %v32
  %v85 = vpack.c.b16 %v70, %v69
  %v86 = vpack.c.b16 %v72, %v71
  %v87 = vpack.c.b16 %v74, %v73
  %v88 = vpack.c.b16 %v76, %v75
  %v89 = vpack.c.b16 %v78, %v77
  %v90 = vpack.c.b16 %v80, %v79
  %v91 = vpack.c.b16 %v82, %v81
  %v92 = vpack.c.b16 %v84, %v83
  %v117 = vunpack.c.l.b16 %v33
  %v118 = vunpack.c.l.b16 %v34
  %v119 = vunpack.c.l.b16 %v35
  %v120 = vunpack.c.l.b16 %v36
  %v121 = vunpack.c.l.b16 %v37
  %v122 = vunpack.c.l.b16 %v38
  %v123 = vunpack.c.l.b16 %v39
  %v124 = vunpack.c.l.b16 %v40
  %v125 = vunpack.c.l.b16 %v41
  %v126 = vunpack.c.l.b16 %v42
  %v127 = vunpack.c.l.b16 %v43
  %v128 = vunpack.c.l.b16 %v44
  %v129 = vunpack.c.l.b16 %v45
  %v130 = vunpack.c.l.b16 %v46
  %v131 = vunpack.c.l.b16 %v47
  %v132 = vunpack.c.l.b16 %v48
  %v133 = vpack.c.b16 %v118, %v117
  %v134 = vpack.c.b16 %v120, %v119
  %v135 = vpack.c.b16 %v122, %v121
  %v136 = vpack.c.b16 %v124, %v123
  %v137 = vpack.c.b16 %v126, %v125
  %v138 = vpack.c.b16 %v128, %v127
  %v139 = vpack.c.b16 %v130, %v129
  %v140 = vpack.c.b16 %v132, %v131
  %149 = vmatpush.bf16.msra.mxu0 %v140
  %150 = vmatpush.bf16.msra.mxu0 %v139
  %151 = vmatpush.bf16.msra.mxu0 %v138
  %152 = vmatpush.bf16.msra.mxu0 %v137
  %153 = vmatpush.bf16.msra.mxu0 %v136
  %154 = vmatpush.bf16.msra.mxu0 %v135
  %155 = vmatpush.bf16.msra.mxu0 %v134
  %156 = vmatpush.bf16.msra.mxu0 %v133
  %157 = vmatmul.bf16.gmra.mxu0 %v85
  %v158 = vpop.f32.mrf.mxu0
  %v159 = vadd.f32 %v51, %v158
  %v160 = vpop.f32.mrf.mxu0
  %v161 = vadd.f32 %v51, %v160
  %162 = vmatmul.bf16.gmra.mxu0 %v86
  %v163 = vpop.f32.mrf.mxu0
  %v164 = vadd.f32 %v51, %v163
  %v165 = vpop.f32.mrf.mxu0
  %v166 = vadd.f32 %v51, %v165
  %167 = vmatmul.bf16.gmra.mxu0 %v87
  %v168 = vpop.f32.mrf.mxu0
  %v169 = vadd.f32 %v51, %v168
  %v170 = vpop.f32.mrf.mxu0
  %v171 = vadd.f32 %v51, %v170
  %172 = vmatmul.bf16.gmra.mxu0 %v88
  %v173 = vpop.f32.mrf.mxu0
  %v174 = vadd.f32 %v51, %v173
  %v175 = vpop.f32.mrf.mxu0
  %v176 = vadd.f32 %v51, %v175
  %177 = vmatmul.bf16.gmra.mxu0 %v89
  %v178 = vpop.f32.mrf.mxu0
  %v179 = vadd.f32 %v51, %v178
  %v180 = vpop.f32.mrf.mxu0
  %v181 = vadd.f32 %v51, %v180
  %182 = vmatmul.bf16.gmra.mxu0 %v90
  %v183 = vpop.f32.mrf.mxu0
  %v184 = vadd.f32 %v51, %v183
  %v185 = vpop.f32.mrf.mxu0
  %v186 = vadd.f32 %v51, %v185
  %187 = vmatmul.bf16.gmra.mxu0 %v91
  %v188 = vpop.f32.mrf.mxu0
  %v189 = vadd.f32 %v51, %v188
  %v190 = vpop.f32.mrf.mxu0
  %v191 = vadd.f32 %v51, %v190
  %192 = vmatmul.bf16.gmra.mxu0 %v92
  %v193 = vpop.f32.mrf.mxu0
  %v194 = vadd.f32 %v51, %v193
  %v195 = vpop.f32.mrf.mxu0
  %v196 = vadd.f32 %v51, %v195
  %197 = vdwg.mxu0
  %v198 = vmax.f32 %v159, 0.0
  %v199 = vmax.f32 %v161, 0.0
  %v200 = vmax.f32 %v164, 0.0
  %v201 = vmax.f32 %v166, 0.0
  %v202 = vmax.f32 %v169, 0.0
  %v203 = vmax.f32 %v171, 0.0
  %v204 = vmax.f32 %v174, 0.0
  %v205 = vmax.f32 %v176, 0.0
  %v206 = vmax.f32 %v179, 0.0
  %v207 = vmax.f32 %v181, 0.0
  %v208 = vmax.f32 %v184, 0.0
  %v209 = vmax.f32 %v186, 0.0
  %v210 = vmax.f32 %v189, 0.0
  %v211 = vmax.f32 %v191, 0.0
  %v212 = vmax.f32 %v194, 0.0
  %v213 = vmax.f32 %v196, 0.0
  %v214 = vpack.c.bf16 %v199, %v198
  %v215 = vpack.c.bf16 %v201, %v200
  %v216 = vpack.c.bf16 %v203, %v202
  %v217 = vpack.c.bf16 %v205, %v204
  %v218 = vpack.c.bf16 %v207, %v206
  %v219 = vpack.c.bf16 %v209, %v208
  %v220 = vpack.c.bf16 %v211, %v210
  %v221 = vpack.c.bf16 %v213, %v212
  %v222 = vld [vmem:[%s2] sm:$0xf]
  %v223 = vld [vmem:[%s2 + $0x4] sm:$0xf]
  %v224 = vld [vmem:[%s2 + $0x8] sm:$0xf]
  %v225 = vld [vmem:[%s2 + $0xc] sm:$0xf]
  %v226 = vld [vmem:[%s2 + $0x10] sm:$0xf]
  %v227 = vld [vmem:[%s2 + $0x14] sm:$0xf]
  %v228 = vld [vmem:[%s2 + $0x18] sm:$0xf]
  %v229 = vld [vmem:[%s2 + $0x1c] sm:$0xf]
  %v230 = vld [vmem:[%s2 + $0x20] sm:$0xf]
  %v231 = vld [vmem:[%s2 + $0x24] sm:$0xf]
  %v232 = vld [vmem:[%s2 + $0x28] sm:$0xf]
  %v233 = vld [vmem:[%s2 + $0x2c] sm:$0xf]
  %v234 = vld [vmem:[%s2 + $0x30] sm:$0xf]
  %v235 = vld [vmem:[%s2 + $0x34] sm:$0xf]
  %v236 = vld [vmem:[%s2 + $0x38] sm:$0xf]
  %v237 = vld [vmem:[%s2 + $0x3c] sm:$0xf]
  %v254 = vunpack.c.l.b16 %v222
  %v255 = vunpack.c.l.b16 %v223
  %v256 = vunpack.c.l.b16 %v224
  %v257 = vunpack.c.l.b16 %v225
  %v258 = vunpack.c.l.b16 %v226
  %v259 = vunpack.c.l.b16 %v227
  %v260 = vunpack.c.l.b16 %v228
  %v261 = vunpack.c.l.b16 %v229
  %v262 = vunpack.c.l.b16 %v230
  %v263 = vunpack.c.l.b16 %v231
  %v264 = vunpack.c.l.b16 %v232
  %v265 = vunpack.c.l.b16 %v233
  %v266 = vunpack.c.l.b16 %v234
  %v267 = vunpack.c.l.b16 %v235
  %v268 = vunpack.c.l.b16 %v236
  %v269 = vunpack.c.l.b16 %v237
  %v270 = vpack.c.b16 %v255, %v254
  %v271 = vpack.c.b16 %v257, %v256
  %v272 = vpack.c.b16 %v259, %v258
  %v273 = vpack.c.b16 %v261, %v260
  %v274 = vpack.c.b16 %v263, %v262
  %v275 = vpack.c.b16 %v265, %v264
  %v276 = vpack.c.b16 %v267, %v266
  %v277 = vpack.c.b16 %v269, %v268
  %286 = vmatpush.bf16.msra.mxu0 %v277
  %287 = vmatpush.bf16.msra.mxu0 %v276
  %288 = vmatpush.bf16.msra.mxu0 %v275
  %289 = vmatpush.bf16.msra.mxu0 %v274
  %290 = vmatpush.bf16.msra.mxu0 %v273
  %291 = vmatpush.bf16.msra.mxu0 %v272
  %292 = vmatpush.bf16.msra.mxu0 %v271
  %293 = vmatpush.bf16.msra.mxu0 %v270
  %294 = vmatmul.bf16.gmra.mxu0 %v214
  %v295 = vpop.f32.mrf.mxu0
  %v296 = vadd.f32 0.0, %v295
  %v297 = vpop.f32.mrf.mxu0
  %v298 = vadd.f32 0.0, %v297
  %299 = vmatmul.bf16.gmra.mxu0 %v215
  %v300 = vpop.f32.mrf.mxu0
  %v301 = vadd.f32 0.0, %v300
  %v302 = vpop.f32.mrf.mxu0
  %v303 = vadd.f32 0.0, %v302
  %304 = vmatmul.bf16.gmra.mxu0 %v216
  %v305 = vpop.f32.mrf.mxu0
  %v306 = vadd.f32 0.0, %v305
  %v307 = vpop.f32.mrf.mxu0
  %v308 = vadd.f32 0.0, %v307
  %309 = vmatmul.bf16.gmra.mxu0 %v217
  %v310 = vpop.f32.mrf.mxu0
  %v311 = vadd.f32 0.0, %v310
  %v312 = vpop.f32.mrf.mxu0
  %v313 = vadd.f32 0.0, %v312
  %314 = vmatmul.bf16.gmra.mxu0 %v218
  %v315 = vpop.f32.mrf.mxu0
  %v316 = vadd.f32 0.0, %v315
  %v317 = vpop.f32.mrf.mxu0
  %v318 = vadd.f32 0.0, %v317
  %319 = vmatmul.bf16.gmra.mxu0 %v219
  %v320 = vpop.f32.mrf.mxu0
  %v321 = vadd.f32 0.0, %v320
  %v322 = vpop.f32.mrf.mxu0
  %v323 = vadd.f32 0.0, %v322
  %324 = vmatmul.bf16.gmra.mxu0 %v220
  %v325 = vpop.f32.mrf.mxu0
  %v326 = vadd.f32 0.0, %v325
  %v327 = vpop.f32.mrf.mxu0
  %v328 = vadd.f32 0.0, %v327
  %329 = vmatmul.bf16.gmra.mxu0 %v221
  %v330 = vpop.f32.mrf.mxu0
  %v331 = vadd.f32 0.0, %v330
  %v332 = vpop.f32.mrf.mxu0
  %v333 = vadd.f32 0.0, %v332
  %334 = vdwg.mxu0
  %v335 = vpack.c.bf16 %v296, %v296
  %v336 = vpack.c.bf16 %v298, %v298
  %v337 = vpack.c.bf16 %v301, %v301
  %v338 = vpack.c.bf16 %v303, %v303
  %v339 = vpack.c.bf16 %v306, %v306
  %v340 = vpack.c.bf16 %v308, %v308
  %v341 = vpack.c.bf16 %v311, %v311
  %v342 = vpack.c.bf16 %v313, %v313
  %v343 = vpack.c.bf16 %v316, %v316
  %v344 = vpack.c.bf16 %v318, %v318
  %v345 = vpack.c.bf16 %v321, %v321
  %v346 = vpack.c.bf16 %v323, %v323
  %v347 = vpack.c.bf16 %v326, %v326
  %v348 = vpack.c.bf16 %v328, %v328
  %v349 = vpack.c.bf16 %v331, %v331
  %v350 = vpack.c.bf16 %v333, %v333
  %351 = vst [vmem:[%s4] sm:$0xf] %v335
  %352 = vst [vmem:[%s4 + $0x4] sm:$0xf] %v336
  %353 = vst [vmem:[%s4 + $0x8] sm:$0xf] %v337
  %354 = vst [vmem:[%s4 + $0xc] sm:$0xf] %v338
  %355 = vst [vmem:[%s4 + $0x10] sm:$0xf] %v339
  %356 = vst [vmem:[%s4 + $0x14] sm:$0xf] %v340
  %357 = vst [vmem:[%s4 + $0x18] sm:$0xf] %v341
  %358 = vst [vmem:[%s4 + $0x1c] sm:$0xf] %v342
  %359 = vst [vmem:[%s4 + $0x20] sm:$0xf] %v343
  %360 = vst [vmem:[%s4 + $0x24] sm:$0xf] %v344
  %361 = vst [vmem:[%s4 + $0x28] sm:$0xf] %v345
  %362 = vst [vmem:[%s4 + $0x2c] sm:$0xf] %v346
  %363 = vst [vmem:[%s4 + $0x30] sm:$0xf] %v347
  %364 = vst [vmem:[%s4 + $0x34] sm:$0xf] %v348
  %365 = vst [vmem:[%s4 + $0x38] sm:$0xf] %v349
  %366 = vst [vmem:[%s4 + $0x3c] sm:$0xf] %v350
  // Predicated region
  $region18: #{d_forward.4} parent=0 // pred_check
    _
  $region19: #{d_forward.4} parent=0 // pred_check_branch
    %368 = sbr.rel (0) target = $region21
  $region20: #{d_forward.4} parent=0 // pred_region
    _
  $region21: #{d_forward.4} parent=0 // pred_fallthru
    _
  // Predicated region
  $region22: #{d_forward.4} parent=0 // pred_check
    _
  $region23: #{d_forward.4} parent=0 // pred_check_branch
    %370 = sbr.rel (0) target = $region25
  $region24: #{d_forward.4} parent=0 // pred_region
    _
  $region25: #{d_forward.4} parent=0 // pred_fallthru
    _

// kernel: d_forward.5
$region0: #{d_forward.5}
  #allocation0 [shape = 'u32[]', space=smem, size = 0x4, offset = 0x4, fixed_abs, tag = 'smem constant byte address 0x4 - core index']
  #allocation1 [shape = 'u32[72,128]{1,0:T(1,128)}', space=vmem, size = 0x9000, scoped, tag = 'internal scratch']
  %s0 = inlined_call_operand.vmem [shape: bf16[128,128], index: 0, kind: input, shape index: {}]
  %s1 = inlined_call_operand.vmem [shape: bf16[128,128], index: 1, kind: input, shape index: {}]
  %s2 = inlined_call_operand.hbm [shape: bf16[128,128], index: 2, kind: input, shape index: {}]
  %s3 = inlined_call_operand.hbm [shape: bf16[128,128], index: 3, kind: input, shape index: {}]
  %s4 = inlined_call_operand.vmem [shape: f32[1,384], index: 4, kind: input, shape index: {}]
  %s5 = inlined_call_operand.vmem [shape: f32[128,128], index: 5, kind: output, shape index: {}]
  %s6 = sld [smem:[#allocation0]]
  $region38: #{d_forward.5} parent=0
    _
  %s8 = ssub.s32 1, %s6
  %s9 = scalar_select 0, %s8, %s6
  $region1: #{d_forward.5} parent=0
    #allocation2 [shape = 'u8[32768]{0}', space=vmem, size = 0x8000, scoped, tag = 'input window, operand 2, single buffered']
    #allocation3 [shape = 's32[1]{0}', space=sflag, size = 0x4, scoped, tag = 'scoped memory for d_forward.5']
    #allocation4 [shape = 'u8[32768]{0}', space=vmem, size = 0x8000, scoped, tag = 'input window, operand 3, single buffered']
    #allocation5 [shape = 's32[1]{0}', space=sflag, size = 0x4, scoped, tag = 'scoped memory for d_forward.5']
    %10 = vsyncpa [#allocation3], 0
    %11 = vsyncpa [#allocation5], 0
    // Predicated region
    $region2: #{d_forward.5} parent=1 // pred_check
      _
    $region3: #{d_forward.5} parent=1 // pred_check_branch
      %13 = sbr.rel (0) target = $region5
    $region4: #{d_forward.5} parent=1 // pred_region
      _
    $region5: #{d_forward.5} parent=1 // pred_fallthru
      _
    // Predicated region
    $region6: #{d_forward.5} parent=1 // pred_check
      _
    $region7: #{d_forward.5} parent=1 // pred_check_branch
      %15 = sbr.rel (0) target = $region9
    $region8: #{d_forward.5} parent=1 // pred_region
      _
    $region9: #{d_forward.5} parent=1 // pred_fallthru
      _
    // Predicated region
    $region10: #{d_forward.5} parent=1 // pred_check
      _
    $region11: #{d_forward.5} parent=1 // pred_check_branch
      %17 = sbr.rel (0) target = $region13
    $region12: #{d_forward.5} parent=1 // pred_region
      %19 = vsyncadd [#allocation3], 0
      %s20 = sshll.u32 %s2, 4
      %s21 = int_to_ptr.hbm [resolvable:$true] %s20
      %s22 = sshll.u32 [#allocation2], 4
      %s23 = int_to_ptr.vmem [resolvable:$true] %s22
      %28 = dma.hbm_to_vmem [thread:$0]  %s21, 1024, %s23, [#allocation3], 64, 64, 4
    $region13: #{d_forward.5} parent=1 // pred_fallthru
      _
    // Predicated region
    $region14: #{d_forward.5} parent=1 // pred_check
      _
    $region15: #{d_forward.5} parent=1 // pred_check_branch
      %30 = sbr.rel (0) target = $region17
    $region16: #{d_forward.5} parent=1 // pred_region
      %32 = vsyncadd [#allocation5], 0
      %s33 = sshll.u32 %s3, 4
      %s34 = int_to_ptr.hbm [resolvable:$true] %s33
      %s35 = sshll.u32 [#allocation4], 4
      %s36 = int_to_ptr.vmem [resolvable:$true] %s35
      %41 = dma.hbm_to_vmem [thread:$0]  %s34, 1024, %s36, [#allocation5], 64, 64, 4
    $region17: #{d_forward.5} parent=1 // pred_fallthru
      _
    // Predicated region
    $region18: #{d_forward.5} parent=1 // pred_check
      _
    $region19: #{d_forward.5} parent=1 // pred_check_branch
      %43 = sbr.rel (0) target = $region21
    $region20: #{d_forward.5} parent=1 // pred_region
      _
    $region21: #{d_forward.5} parent=1 // pred_fallthru
      _
    // Predicated region
    $region22: #{d_forward.5} parent=1 // pred_check
      _
    $region23: #{d_forward.5} parent=1 // pred_check_branch
      %45 = sbr.rel (0) target = $region25
    $region24: #{d_forward.5} parent=1 // pred_region
      %47 = dma.done [#allocation3], 1024
    $region25: #{d_forward.5} parent=1 // pred_fallthru
      _
    // Predicated region
    $region26: #{d_forward.5} parent=1 // pred_check
      _
    $region27: #{d_forward.5} parent=1 // pred_check_branch
      %49 = sbr.rel (0) target = $region29
    $region28: #{d_forward.5} parent=1 // pred_region
      %51 = dma.done [#allocation5], 1024
    $region29: #{d_forward.5} parent=1 // pred_fallthru
      _
    %v52 = vld [vmem:[%s4] sm:$0x1]
    %v53 = vld [vmem:[%s4 + $0x1] sm:$0x1]
    %v54 = vld [vmem:[%s4 + $0x2] sm:$0x1]
    %v55 = vld [vmem:[%s0] sm:$0xf]
    %v56 = vld [vmem:[%s0 + $0x4] sm:$0xf]
    %v57 = vld [vmem:[%s0 + $0x8] sm:$0xf]
    %v58 = vld [vmem:[%s0 + $0xc] sm:$0xf]
    %v59 = vld [vmem:[%s0 + $0x10] sm:$0xf]
    %v60 = vld [vmem:[%s0 + $0x14] sm:$0xf]
    %v61 = vld [vmem:[%s0 + $0x18] sm:$0xf]
    %v62 = vld [vmem:[%s0 + $0x1c] sm:$0xf]
    %v63 = vld [vmem:[%s0 + $0x20] sm:$0xf]
    %v64 = vld [vmem:[%s0 + $0x24] sm:$0xf]
    %v65 = vld [vmem:[%s0 + $0x28] sm:$0xf]
    %v66 = vld [vmem:[%s0 + $0x2c] sm:$0xf]
    %v67 = vld [vmem:[%s0 + $0x30] sm:$0xf]
    %v68 = vld [vmem:[%s0 + $0x34] sm:$0xf]
    %v69 = vld [vmem:[%s0 + $0x38] sm:$0xf]
    %v70 = vld [vmem:[%s0 + $0x3c] sm:$0xf]
    %v71 = vld [vmem:[%s1] sm:$0xf]
    %v72 = vld [vmem:[%s1 + $0x4] sm:$0xf]
    %v73 = vld [vmem:[%s1 + $0x8] sm:$0xf]
    %v74 = vld [vmem:[%s1 + $0xc] sm:$0xf]
    %v75 = vld [vmem:[%s1 + $0x10] sm:$0xf]
    %v76 = vld [vmem:[%s1 + $0x14] sm:$0xf]
    %v77 = vld [vmem:[%s1 + $0x18] sm:$0xf]
    %v78 = vld [vmem:[%s1 + $0x1c] sm:$0xf]
    %v79 = vld [vmem:[%s1 + $0x20] sm:$0xf]
    %v80 = vld [vmem:[%s1 + $0x24] sm:$0xf]
    %v81 = vld [vmem:[%s1 + $0x28] sm:$0xf]
    %v82 = vld [vmem:[%s1 + $0x2c] sm:$0xf]
    %v83 = vld [vmem:[%s1 + $0x30] sm:$0xf]
    %v84 = vld [vmem:[%s1 + $0x34] sm:$0xf]
    %v85 = vld [vmem:[%s1 + $0x38] sm:$0xf]
    %v86 = vld [vmem:[%s1 + $0x3c] sm:$0xf]
    %v88 = vperm.slane %v52, 0
    %v106 = vunpack.c.l.b16 %v55
    %v107 = vunpack.c.l.b16 %v56
    %v108 = vunpack.c.l.b16 %v57
    %v109 = vunpack.c.l.b16 %v58
    %v110 = vunpack.c.l.b16 %v59
    %v111 = vunpack.c.l.b16 %v60
    %v112 = vunpack.c.l.b16 %v61
    %v113 = vunpack.c.l.b16 %v62
    %v114 = vunpack.c.l.b16 %v63
    %v115 = vunpack.c.l.b16 %v64
    %v116 = vunpack.c.l.b16 %v65
    %v117 = vunpack.c.l.b16 %v66
    %v118 = vunpack.c.l.b16 %v67
    %v119 = vunpack.c.l.b16 %v68
    %v120 = vunpack.c.l.b16 %v69
    %v121 = vunpack.c.l.b16 %v70
    %v122 = vpack.c.b16 %v107, %v106
    %v123 = vpack.c.b16 %v109, %v108
    %v124 = vpack.c.b16 %v111, %v110
    %v125 = vpack.c.b16 %v113, %v112
    %v126 = vpack.c.b16 %v115, %v114
    %v127 = vpack.c.b16 %v117, %v116
    %v128 = vpack.c.b16 %v119, %v118
    %v129 = vpack.c.b16 %v121, %v120
    %v154 = vunpack.c.l.b16 %v71
    %v155 = vunpack.c.l.b16 %v72
    %v156 = vunpack.c.l.b16 %v73
    %v157 = vunpack.c.l.b16 %v74
    %v158 = vunpack.c.l.b16 %v75
    %v159 = vunpack.c.l.b16 %v76
    %v160 = vunpack.c.l.b16 %v77
    %v161 = vunpack.c.l.b16 %v78
    %v162 = vunpack.c.l.b16 %v79
    %v163 = vunpack.c.l.b16 %v80
    %v164 = vunpack.c.l.b16 %v81
    %v165 = vunpack.c.l.b16 %v82
    %v166 = vunpack.c.l.b16 %v83
    %v167 = vunpack.c.l.b16 %v84
    %v168 = vunpack.c.l.b16 %v85
    %v169 = vunpack.c.l.b16 %v86
    %v170 = vpack.c.b16 %v155, %v154
    %v171 = vpack.c.b16 %v157, %v156
    %v172 = vpack.c.b16 %v159, %v158
    %v173 = vpack.c.b16 %v161, %v160
    %v174 = vpack.c.b16 %v163, %v162
    %v175 = vpack.c.b16 %v165, %v164
    %v176 = vpack.c.b16 %v167, %v166
    %v177 = vpack.c.b16 %v169, %v168
    %186 = vmatpush.bf16.msra.mxu0 %v177
    %187 = vmatpush.bf16.msra.mxu0 %v176
    %188 = vmatpush.bf16.msra.mxu0 %v175
    %189 = vmatpush.bf16.msra.mxu0 %v174
    %190 = vmatpush.bf16.msra.mxu0 %v173
    %191 = vmatpush.bf16.msra.mxu0 %v172
    %192 = vmatpush.bf16.msra.mxu0 %v171
    %193 = vmatpush.bf16.msra.mxu0 %v170
    %194 = vmatmul.bf16.gmra.mxu0 %v122
    %v195 = vpop.f32.mrf.mxu0
    %v196 = vadd.f32 %v88, %v195
    %v197 = vpop.f32.mrf.mxu0
    %v198 = vadd.f32 %v88, %v197
    %199 = vmatmul.bf16.gmra.mxu0 %v123
    %v200 = vpop.f32.mrf.mxu0
    %v201 = vadd.f32 %v88, %v200
    %v202 = vpop.f32.mrf.mxu0
    %v203 = vadd.f32 %v88, %v202
    %204 = vmatmul.bf16.gmra.mxu0 %v124
    %v205 = vpop.f32.mrf.mxu0
    %v206 = vadd.f32 %v88, %v205
    %v207 = vpop.f32.mrf.mxu0
    %v208 = vadd.f32 %v88, %v207
    %209 = vmatmul.bf16.gmra.mxu0 %v125
    %v210 = vpop.f32.mrf.mxu0
    %v211 = vadd.f32 %v88, %v210
    %v212 = vpop.f32.mrf.mxu0
    %v213 = vadd.f32 %v88, %v212
    %214 = vmatmul.bf16.gmra.mxu0 %v126
    %v215 = vpop.f32.mrf.mxu0
    %v216 = vadd.f32 %v88, %v215
    %v217 = vpop.f32.mrf.mxu0
    %v218 = vadd.f32 %v88, %v217
    %219 = vmatmul.bf16.gmra.mxu0 %v127
    %v220 = vpop.f32.mrf.mxu0
    %v221 = vadd.f32 %v88, %v220
    %v222 = vpop.f32.mrf.mxu0
    %v223 = vadd.f32 %v88, %v222
    %224 = vmatmul.bf16.gmra.mxu0 %v128
    %v225 = vpop.f32.mrf.mxu0
    %v226 = vadd.f32 %v88, %v225
    %v227 = vpop.f32.mrf.mxu0
    %v228 = vadd.f32 %v88, %v227
    %229 = vmatmul.bf16.gmra.mxu0 %v129
    %v230 = vpop.f32.mrf.mxu0
    %v231 = vadd.f32 %v88, %v230
    %v232 = vpop.f32.mrf.mxu0
    %v233 = vadd.f32 %v88, %v232
    %234 = vdwg.mxu0
    %v235 = vmax.f32 %v196, 0.0
    %v236 = vmax.f32 %v198, 0.0
    %v237 = vmax.f32 %v201, 0.0
    %v238 = vmax.f32 %v203, 0.0
    %v239 = vmax.f32 %v206, 0.0
    %v240 = vmax.f32 %v208, 0.0
    %v241 = vmax.f32 %v211, 0.0
    %v242 = vmax.f32 %v213, 0.0
    %v243 = vmax.f32 %v216, 0.0
    %v244 = vmax.f32 %v218, 0.0
    %v245 = vmax.f32 %v221, 0.0
    %v246 = vmax.f32 %v223, 0.0
    %v247 = vmax.f32 %v226, 0.0
    %v248 = vmax.f32 %v228, 0.0
    %v249 = vmax.f32 %v231, 0.0
    %v250 = vmax.f32 %v233, 0.0
    %v251 = vpack.c.bf16 %v236, %v235
    %v252 = vpack.c.bf16 %v238, %v237
    %v253 = vpack.c.bf16 %v240, %v239
    %v254 = vpack.c.bf16 %v242, %v241
    %v255 = vpack.c.bf16 %v244, %v243
    %v256 = vpack.c.bf16 %v246, %v245
    %v257 = vpack.c.bf16 %v248, %v247
    %v258 = vpack.c.bf16 %v250, %v249
    %v259 = vld [vmem:[#allocation2] sm:$0xf]
    %v260 = vld [vmem:[#allocation2 + $0x4] sm:$0xf]
    %v261 = vld [vmem:[#allocation2 + $0x8] sm:$0xf]
    %v262 = vld [vmem:[#allocation2 + $0xc] sm:$0xf]
    %v263 = vld [vmem:[#allocation2 + $0x10] sm:$0xf]
    %v264 = vld [vmem:[#allocation2 + $0x14] sm:$0xf]
    %v265 = vld [vmem:[#allocation2 + $0x18] sm:$0xf]
    %v266 = vld [vmem:[#allocation2 + $0x1c] sm:$0xf]
    %v267 = vld [vmem:[#allocation2 + $0x20] sm:$0xf]
    %v268 = vld [vmem:[#allocation2 + $0x24] sm:$0xf]
    %v269 = vld [vmem:[#allocation2 + $0x28] sm:$0xf]
    %v270 = vld [vmem:[#allocation2 + $0x2c] sm:$0xf]
    %v271 = vld [vmem:[#allocation2 + $0x30] sm:$0xf]
    %v272 = vld [vmem:[#allocation2 + $0x34] sm:$0xf]
    %v273 = vld [vmem:[#allocation2 + $0x38] sm:$0xf]
    %v274 = vld [vmem:[#allocation2 + $0x3c] sm:$0xf]
    %v276 = vperm.slane %v53, 0
    %v294 = vunpack.c.l.b16 %v259
    %v295 = vunpack.c.l.b16 %v260
    %v296 = vunpack.c.l.b16 %v261
    %v297 = vunpack.c.l.b16 %v262
    %v298 = vunpack.c.l.b16 %v263
    %v299 = vunpack.c.l.b16 %v264
    %v300 = vunpack.c.l.b16 %v265
    %v301 = vunpack.c.l.b16 %v266
    %v302 = vunpack.c.l.b16 %v267
    %v303 = vunpack.c.l.b16 %v268
    %v304 = vunpack.c.l.b16 %v269
    %v305 = vunpack.c.l.b16 %v270
    %v306 = vunpack.c.l.b16 %v271
    %v307 = vunpack.c.l.b16 %v272
    %v308 = vunpack.c.l.b16 %v273
    %v309 = vunpack.c.l.b16 %v274
    %v310 = vpack.c.b16 %v295, %v294
    %v311 = vpack.c.b16 %v297, %v296
    %v312 = vpack.c.b16 %v299, %v298
    %v313 = vpack.c.b16 %v301, %v300
    %v314 = vpack.c.b16 %v303, %v302
    %v315 = vpack.c.b16 %v305, %v304
    %v316 = vpack.c.b16 %v307, %v306
    %v317 = vpack.c.b16 %v309, %v308
    %326 = vmatpush.bf16.msra.mxu0 %v317
    %327 = vmatpush.bf16.msra.mxu0 %v316
    %328 = vmatpush.bf16.msra.mxu0 %v315
    %329 = vmatpush.bf16.msra.mxu0 %v314
    %330 = vmatpush.bf16.msra.mxu0 %v313
    %331 = vmatpush.bf16.msra.mxu0 %v312
    %332 = vmatpush.bf16.msra.mxu0 %v311
    %333 = vmatpush.bf16.msra.mxu0 %v310
    %334 = vmatmul.bf16.gmra.mxu0 %v251
    %v335 = vpop.f32.mrf.mxu0
    %v336 = vadd.f32 %v276, %v335
    %v337 = vpop.f32.mrf.mxu0
    %v338 = vadd.f32 %v276, %v337
    %339 = vmatmul.bf16.gmra.mxu0 %v252
    %v340 = vpop.f32.mrf.mxu0
    %v341 = vadd.f32 %v276, %v340
    %v342 = vpop.f32.mrf.mxu0
    %v343 = vadd.f32 %v276, %v342
    %344 = vmatmul.bf16.gmra.mxu0 %v253
    %v345 = vpop.f32.mrf.mxu0
    %v346 = vadd.f32 %v276, %v345
    %v347 = vpop.f32.mrf.mxu0
    %v348 = vadd.f32 %v276, %v347
    %349 = vmatmul.bf16.gmra.mxu0 %v254
    %v350 = vpop.f32.mrf.mxu0
    %v351 = vadd.f32 %v276, %v350
    %v352 = vpop.f32.mrf.mxu0
    %v353 = vadd.f32 %v276, %v352
    %354 = vmatmul.bf16.gmra.mxu0 %v255
    %v355 = vpop.f32.mrf.mxu0
    %v356 = vadd.f32 %v276, %v355
    %v357 = vpop.f32.mrf.mxu0
    %v358 = vadd.f32 %v276, %v357
    %359 = vmatmul.bf16.gmra.mxu0 %v256
    %v360 = vpop.f32.mrf.mxu0
    %v361 = vadd.f32 %v276, %v360
    %v362 = vpop.f32.mrf.mxu0
    %v363 = vadd.f32 %v276, %v362
    %364 = vmatmul.bf16.gmra.mxu0 %v257
    %v365 = vpop.f32.mrf.mxu0
    %v366 = vadd.f32 %v276, %v365
    %v367 = vpop.f32.mrf.mxu0
    %v368 = vadd.f32 %v276, %v367
    %369 = vmatmul.bf16.gmra.mxu0 %v258
    %v370 = vpop.f32.mrf.mxu0
    %v371 = vadd.f32 %v276, %v370
    %v372 = vpop.f32.mrf.mxu0
    %v373 = vadd.f32 %v276, %v372
    %374 = vdwg.mxu0
    %v375 = vmax.f32 %v336, 0.0
    %v376 = vmax.f32 %v338, 0.0
    %v377 = vmax.f32 %v341, 0.0
    %v378 = vmax.f32 %v343, 0.0
    %v379 = vmax.f32 %v346, 0.0
    %v380 = vmax.f32 %v348, 0.0
    %v381 = vmax.f32 %v351, 0.0
    %v382 = vmax.f32 %v353, 0.0
    %v383 = vmax.f32 %v356, 0.0
    %v384 = vmax.f32 %v358, 0.0
    %v385 = vmax.f32 %v361, 0.0
    %v386 = vmax.f32 %v363, 0.0
    %v387 = vmax.f32 %v366, 0.0
    %v388 = vmax.f32 %v368, 0.0
    %v389 = vmax.f32 %v371, 0.0
    %v390 = vmax.f32 %v373, 0.0
    %v391 = vpack.c.bf16 %v376, %v375
    %v392 = vpack.c.bf16 %v378, %v377
    %v393 = vpack.c.bf16 %v380, %v379
    %v394 = vpack.c.bf16 %v382, %v381
    %v395 = vpack.c.bf16 %v384, %v383
    %v396 = vpack.c.bf16 %v386, %v385
    %v397 = vpack.c.bf16 %v388, %v387
    %v398 = vpack.c.bf16 %v390, %v389
    %v399 = vld [vmem:[#allocation4] sm:$0xf]
    %v400 = vld [vmem:[#allocation4 + $0x4] sm:$0xf]
    %v401 = vld [vmem:[#allocation4 + $0x8] sm:$0xf]
    %v402 = vld [vmem:[#allocation4 + $0xc] sm:$0xf]
    %v403 = vld [vmem:[#allocation4 + $0x10] sm:$0xf]
    %v404 = vld [vmem:[#allocation4 + $0x14] sm:$0xf]
    %v405 = vld [vmem:[#allocation4 + $0x18] sm:$0xf]
    %v406 = vld [vmem:[#allocation4 + $0x1c] sm:$0xf]
    %v407 = vld [vmem:[#allocation4 + $0x20] sm:$0xf]
    %v408 = vld [vmem:[#allocation4 + $0x24] sm:$0xf]
    %v409 = vld [vmem:[#allocation4 + $0x28] sm:$0xf]
    %v410 = vld [vmem:[#allocation4 + $0x2c] sm:$0xf]
    %v411 = vld [vmem:[#allocation4 + $0x30] sm:$0xf]
    %v412 = vld [vmem:[#allocation4 + $0x34] sm:$0xf]
    %v413 = vld [vmem:[#allocation4 + $0x38] sm:$0xf]
    %v414 = vld [vmem:[#allocation4 + $0x3c] sm:$0xf]
    %v416 = vperm.slane %v54, 0
    %v434 = vunpack.c.l.b16 %v399
    %v435 = vunpack.c.l.b16 %v400
    %v436 = vunpack.c.l.b16 %v401
    %v437 = vunpack.c.l.b16 %v402
    %v438 = vunpack.c.l.b16 %v403
    %v439 = vunpack.c.l.b16 %v404
    %v440 = vunpack.c.l.b16 %v405
    %v441 = vunpack.c.l.b16 %v406
    %v442 = vunpack.c.l.b16 %v407
    %v443 = vunpack.c.l.b16 %v408
    %v444 = vunpack.c.l.b16 %v409
    %v445 = vunpack.c.l.b16 %v410
    %v446 = vunpack.c.l.b16 %v411
    %v447 = vunpack.c.l.b16 %v412
    %v448 = vunpack.c.l.b16 %v413
    %v449 = vunpack.c.l.b16 %v414
    %v450 = vpack.c.b16 %v435, %v434
    %v451 = vpack.c.b16 %v437, %v436
    %v452 = vpack.c.b16 %v439, %v438
    %v453 = vpack.c.b16 %v441, %v440
    %v454 = vpack.c.b16 %v443, %v442
    %v455 = vpack.c.b16 %v445, %v444
    %v456 = vpack.c.b16 %v447, %v446
    %v457 = vpack.c.b16 %v449, %v448
    %466 = vmatpush.bf16.msra.mxu0 %v457
    %467 = vmatpush.bf16.msra.mxu0 %v456
    %468 = vmatpush.bf16.msra.mxu0 %v455
    %469 = vmatpush.bf16.msra.mxu0 %v454
    %470 = vmatpush.bf16.msra.mxu0 %v453
    %471 = vmatpush.bf16.msra.mxu0 %v452
    %472 = vmatpush.bf16.msra.mxu0 %v451
    %473 = vmatpush.bf16.msra.mxu0 %v450
    %474 = vmatmul.bf16.gmra.mxu0 %v391
    %v475 = vpop.f32.mrf.mxu0
    %v476 = vadd.f32 %v416, %v475
    %v477 = vpop.f32.mrf.mxu0
    %v478 = vadd.f32 %v416, %v477
    %479 = vmatmul.bf16.gmra.mxu0 %v392
    %v480 = vpop.f32.mrf.mxu0
    %v481 = vadd.f32 %v416, %v480
    %v482 = vpop.f32.mrf.mxu0
    %v483 = vadd.f32 %v416, %v482
    %484 = vmatmul.bf16.gmra.mxu0 %v393
    %v485 = vpop.f32.mrf.mxu0
    %v486 = vadd.f32 %v416, %v485
    %v487 = vpop.f32.mrf.mxu0
    %v488 = vadd.f32 %v416, %v487
    %489 = vmatmul.bf16.gmra.mxu0 %v394
    %v490 = vpop.f32.mrf.mxu0
    %v491 = vadd.f32 %v416, %v490
    %v492 = vpop.f32.mrf.mxu0
    %v493 = vadd.f32 %v416, %v492
    %494 = vmatmul.bf16.gmra.mxu0 %v395
    %v495 = vpop.f32.mrf.mxu0
    %v496 = vadd.f32 %v416, %v495
    %v497 = vpop.f32.mrf.mxu0
    %v498 = vadd.f32 %v416, %v497
    %499 = vmatmul.bf16.gmra.mxu0 %v396
    %v500 = vpop.f32.mrf.mxu0
    %v501 = vadd.f32 %v416, %v500
    %v502 = vpop.f32.mrf.mxu0
    %v503 = vadd.f32 %v416, %v502
    %504 = vmatmul.bf16.gmra.mxu0 %v397
    %v505 = vpop.f32.mrf.mxu0
    %v506 = vadd.f32 %v416, %v505
    %v507 = vpop.f32.mrf.mxu0
    %v508 = vadd.f32 %v416, %v507
    %509 = vmatmul.bf16.gmra.mxu0 %v398
    %v510 = vpop.f32.mrf.mxu0
    %v511 = vadd.f32 %v416, %v510
    %v512 = vpop.f32.mrf.mxu0
    %v513 = vadd.f32 %v416, %v512
    %514 = vdwg.mxu0
    %v515 = vxor.u32 %v476, 2147483648
    %v516 = vxor.u32 %v478, 2147483648
    %v517 = vxor.u32 %v481, 2147483648
    %v518 = vxor.u32 %v483, 2147483648
    %v519 = vxor.u32 %v486, 2147483648
    %v520 = vxor.u32 %v488, 2147483648
    %v521 = vxor.u32 %v491, 2147483648
    %v522 = vxor.u32 %v493, 2147483648
    %v523 = vxor.u32 %v496, 2147483648
    %v524 = vxor.u32 %v498, 2147483648
    %v525 = vxor.u32 %v501, 2147483648
    %v526 = vxor.u32 %v503, 2147483648
    %v527 = vxor.u32 %v506, 2147483648
    %v528 = vxor.u32 %v508, 2147483648
    %v529 = vxor.u32 %v511, 2147483648
    %v530 = vxor.u32 %v513, 2147483648
    %v531 = vmul.f32 %v515, 1.442695
    %v532 = vpow.pop %v531
    %v533 = vmul.f32 %v516, 1.442695
    %v534 = vpow.pop %v533
    %v535 = vmul.f32 %v517, 1.442695
    %v536 = vpow.pop %v535
    %v537 = vmul.f32 %v518, 1.442695
    %v538 = vpow.pop %v537
    %v539 = vmul.f32 %v519, 1.442695
    %v540 = vpow.pop %v539
    %v541 = vmul.f32 %v520, 1.442695
    %v542 = vpow.pop %v541
    %v543 = vmul.f32 %v521, 1.442695
    %v544 = vpow.pop %v543
    %v545 = vmul.f32 %v522, 1.442695
    %v546 = vpow.pop %v545
    %v547 = vmul.f32 %v523, 1.442695
    %v548 = vpow.pop %v547
    %v549 = vmul.f32 %v524, 1.442695
    %v550 = vpow.pop %v549
    %v551 = vmul.f32 %v525, 1.442695
    %v552 = vpow.pop %v551
    %v553 = vmul.f32 %v526, 1.442695
    %v554 = vpow.pop %v553
    %v555 = vmul.f32 %v527, 1.442695
    %v556 = vpow.pop %v555
    %v557 = vmul.f32 %v528, 1.442695
    %v558 = vpow.pop %v557
    %v559 = vmul.f32 %v529, 1.442695
    %v560 = vpow.pop %v559
    %v561 = vmul.f32 %v530, 1.442695
    %v562 = vpow.pop %v561
    %v563 = vadd.f32 %v532, 1.0
    %v564 = vadd.f32 %v534, 1.0
    %v565 = vadd.f32 %v536, 1.0
    %v566 = vadd.f32 %v538, 1.0
    %v567 = vadd.f32 %v540, 1.0
    %v568 = vadd.f32 %v542, 1.0
    %v569 = vadd.f32 %v544, 1.0
    %v570 = vadd.f32 %v546, 1.0
    %v571 = vadd.f32 %v548, 1.0
    %v572 = vadd.f32 %v550, 1.0
    %v573 = vadd.f32 %v552, 1.0
    %v574 = vadd.f32 %v554, 1.0
    %v575 = vadd.f32 %v556, 1.0
    %v576 = vadd.f32 %v558, 1.0
    %v577 = vadd.f32 %v560, 1.0
    %v578 = vadd.f32 %v562, 1.0
    %v579 = vrcp.pop %v563
    %v580 = vmul.f32 %v563, %v579
    %v581 = vsub.f32 1.0, %v580
    %v582 = vmul.f32 %v579, %v581
    %v583 = vadd.f32 %v579, %v582
    %vm584 = vweird.f32 %v563
    %vm585 = vweird.f32 %v579
    %vm586 = vmor %vm584, %vm585
    %v587 = vsel %vm586, %v579, %v583
    %v588 = vand.u32 2147483647, %v563
    %vm589 = vcmp.eq.f32.partialorder %v588, 8.507059e+37
    %v590 = vand.u32 %v563, 2147483648
    %v591 = vor.u32 1.1754944e-38, %v590
    %v592 = vsel %vm589, %v591, %v587
    %v593 = vmul.f32 1.0, %v592
    %v594 = vrcp.pop %v564
    %v595 = vmul.f32 %v564, %v594
    %v596 = vsub.f32 1.0, %v595
    %v597 = vmul.f32 %v594, %v596
    %v598 = vadd.f32 %v594, %v597
    %vm599 = vweird.f32 %v564
    %vm600 = vweird.f32 %v594
    %vm601 = vmor %vm599, %vm600
    %v602 = vsel %vm601, %v594, %v598
    %v603 = vand.u32 2147483647, %v564
    %vm604 = vcmp.eq.f32.partialorder %v603, 8.507059e+37
    %v605 = vand.u32 %v564, 2147483648
    %v606 = vor.u32 1.1754944e-38, %v605
    %v607 = vsel %vm604, %v606, %v602
    %v608 = vmul.f32 1.0, %v607
    %v609 = vrcp.pop %v565
    %v610 = vmul.f32 %v565, %v609
    %v611 = vsub.f32 1.0, %v610
    %v612 = vmul.f32 %v609, %v611
    %v613 = vadd.f32 %v609, %v612
    %vm614 = vweird.f32 %v565
    %vm615 = vweird.f32 %v609
    %vm616 = vmor %vm614, %vm615
    %v617 = vsel %vm616, %v609, %v613
    %v618 = vand.u32 2147483647, %v565
    %vm619 = vcmp.eq.f32.partialorder %v618, 8.507059e+37
    %v620 = vand.u32 %v565, 2147483648
    %v621 = vor.u32 1.1754944e-38, %v620
    %v622 = vsel %vm619, %v621, %v617
    %v623 = vmul.f32 1.0, %v622
    %v624 = vrcp.pop %v566
    %v625 = vmul.f32 %v566, %v624
    %v626 = vsub.f32 1.0, %v625
    %v627 = vmul.f32 %v624, %v626
    %v628 = vadd.f32 %v624, %v627
    %vm629 = vweird.f32 %v566
    %vm630 = vweird.f32 %v624
    %vm631 = vmor %vm629, %vm630
    %v632 = vsel %vm631, %v624, %v628
    %v633 = vand.u32 2147483647, %v566
    %vm634 = vcmp.eq.f32.partialorder %v633, 8.507059e+37
    %v635 = vand.u32 %v566, 2147483648
    %v636 = vor.u32 1.1754944e-38, %v635
    %v637 = vsel %vm634, %v636, %v632
    %v638 = vmul.f32 1.0, %v637
    %v639 = vrcp.pop %v567
    %v640 = vmul.f32 %v567, %v639
    %v641 = vsub.f32 1.0, %v640
    %v642 = vmul.f32 %v639, %v641
    %v643 = vadd.f32 %v639, %v642
    %vm644 = vweird.f32 %v567
    %vm645 = vweird.f32 %v639
    %vm646 = vmor %vm644, %vm645
    %v647 = vsel %vm646, %v639, %v643
    %v648 = vand.u32 2147483647, %v567
    %vm649 = vcmp.eq.f32.partialorder %v648, 8.507059e+37
    %v650 = vand.u32 %v567, 2147483648
    %v651 = vor.u32 1.1754944e-38, %v650
    %v652 = vsel %vm649, %v651, %v647
    %v653 = vmul.f32 1.0, %v652
    %v654 = vrcp.pop %v568
    %v655 = vmul.f32 %v568, %v654
    %v656 = vsub.f32 1.0, %v655
    %v657 = vmul.f32 %v654, %v656
    %v658 = vadd.f32 %v654, %v657
    %vm659 = vweird.f32 %v568
    %vm660 = vweird.f32 %v654
    %vm661 = vmor %vm659, %vm660
    %v662 = vsel %vm661, %v654, %v658
    %v663 = vand.u32 2147483647, %v568
    %vm664 = vcmp.eq.f32.partialorder %v663, 8.507059e+37
    %v665 = vand.u32 %v568, 2147483648
    %v666 = vor.u32 1.1754944e-38, %v665
    %v667 = vsel %vm664, %v666, %v662
    %v668 = vmul.f32 1.0, %v667
    %v669 = vrcp.pop %v569
    %v670 = vmul.f32 %v569, %v669
    %v671 = vsub.f32 1.0, %v670
    %v672 = vmul.f32 %v669, %v671
    %v673 = vadd.f32 %v669, %v672
    %vm674 = vweird.f32 %v569
    %vm675 = vweird.f32 %v669
    %vm676 = vmor %vm674, %vm675
    %v677 = vsel %vm676, %v669, %v673
    %v678 = vand.u32 2147483647, %v569
    %vm679 = vcmp.eq.f32.partialorder %v678, 8.507059e+37
    %v680 = vand.u32 %v569, 2147483648
    %v681 = vor.u32 1.1754944e-38, %v680
    %v682 = vsel %vm679, %v681, %v677
    %v683 = vmul.f32 1.0, %v682
    %v684 = vrcp.pop %v570
    %v685 = vmul.f32 %v570, %v684
    %v686 = vsub.f32 1.0, %v685
    %v687 = vmul.f32 %v684, %v686
    %v688 = vadd.f32 %v684, %v687
    %vm689 = vweird.f32 %v570
    %vm690 = vweird.f32 %v684
    %vm691 = vmor %vm689, %vm690
    %v692 = vsel %vm691, %v684, %v688
    %v693 = vand.u32 2147483647, %v570
    %vm694 = vcmp.eq.f32.partialorder %v693, 8.507059e+37
    %v695 = vand.u32 %v570, 2147483648
    %v696 = vor.u32 1.1754944e-38, %v695
    %v697 = vsel %vm694, %v696, %v692
    %v698 = vmul.f32 1.0, %v697
    %v699 = vrcp.pop %v571
    %v700 = vmul.f32 %v571, %v699
    %v701 = vsub.f32 1.0, %v700
    %v702 = vmul.f32 %v699, %v701
    %v703 = vadd.f32 %v699, %v702
    %vm704 = vweird.f32 %v571
    %vm705 = vweird.f32 %v699
    %vm706 = vmor %vm704, %vm705
    %v707 = vsel %vm706, %v699, %v703
    %v708 = vand.u32 2147483647, %v571
    %vm709 = vcmp.eq.f32.partialorder %v708, 8.507059e+37
    %v710 = vand.u32 %v571, 2147483648
    %v711 = vor.u32 1.1754944e-38, %v710
    %v712 = vsel %vm709, %v711, %v707
    %v713 = vmul.f32 1.0, %v712
    %v714 = vrcp.pop %v572
    %v715 = vmul.f32 %v572, %v714
    %v716 = vsub.f32 1.0, %v715
    %v717 = vmul.f32 %v714, %v716
    %v718 = vadd.f32 %v714, %v717
    %vm719 = vweird.f32 %v572
    %vm720 = vweird.f32 %v714
    %vm721 = vmor %vm719, %vm720
    %v722 = vsel %vm721, %v714, %v718
    %v723 = vand.u32 2147483647, %v572
    %vm724 = vcmp.eq.f32.partialorder %v723, 8.507059e+37
    %v725 = vand.u32 %v572, 2147483648
    %v726 = vor.u32 1.1754944e-38, %v725
    %v727 = vsel %vm724, %v726, %v722
    %v728 = vmul.f32 1.0, %v727
    %v729 = vrcp.pop %v573
    %v730 = vmul.f32 %v573, %v729
    %v731 = vsub.f32 1.0, %v730
    %v732 = vmul.f32 %v729, %v731
    %v733 = vadd.f32 %v729, %v732
    %vm734 = vweird.f32 %v573
    %vm735 = vweird.f32 %v729
    %vm736 = vmor %vm734, %vm735
    %v737 = vsel %vm736, %v729, %v733
    %v738 = vand.u32 2147483647, %v573
    %vm739 = vcmp.eq.f32.partialorder %v738, 8.507059e+37
    %v740 = vand.u32 %v573, 2147483648
    %v741 = vor.u32 1.1754944e-38, %v740
    %v742 = vsel %vm739, %v741, %v737
    %v743 = vmul.f32 1.0, %v742
    %v744 = vrcp.pop %v574
    %v745 = vmul.f32 %v574, %v744
    %v746 = vsub.f32 1.0, %v745
    %v747 = vmul.f32 %v744, %v746
    %v748 = vadd.f32 %v744, %v747
    %vm749 = vweird.f32 %v574
    %vm750 = vweird.f32 %v744
    %vm751 = vmor %vm749, %vm750
    %v752 = vsel %vm751, %v744, %v748
    %v753 = vand.u32 2147483647, %v574
    %vm754 = vcmp.eq.f32.partialorder %v753, 8.507059e+37
    %v755 = vand.u32 %v574, 2147483648
    %v756 = vor.u32 1.1754944e-38, %v755
    %v757 = vsel %vm754, %v756, %v752
    %v758 = vmul.f32 1.0, %v757
    %v759 = vrcp.pop %v575
    %v760 = vmul.f32 %v575, %v759
    %v761 = vsub.f32 1.0, %v760
    %v762 = vmul.f32 %v759, %v761
    %v763 = vadd.f32 %v759, %v762
    %vm764 = vweird.f32 %v575
    %vm765 = vweird.f32 %v759
    %vm766 = vmor %vm764, %vm765
    %v767 = vsel %vm766, %v759, %v763
    %v768 = vand.u32 2147483647, %v575
    %vm769 = vcmp.eq.f32.partialorder %v768, 8.507059e+37
    %v770 = vand.u32 %v575, 2147483648
    %v771 = vor.u32 1.1754944e-38, %v770
    %v772 = vsel %vm769, %v771, %v767
    %v773 = vmul.f32 1.0, %v772
    %v774 = vrcp.pop %v576
    %v775 = vmul.f32 %v576, %v774
    %v776 = vsub.f32 1.0, %v775
    %v777 = vmul.f32 %v774, %v776
    %v778 = vadd.f32 %v774, %v777
    %vm779 = vweird.f32 %v576
    %vm780 = vweird.f32 %v774
    %vm781 = vmor %vm779, %vm780
    %v782 = vsel %vm781, %v774, %v778
    %v783 = vand.u32 2147483647, %v576
    %vm784 = vcmp.eq.f32.partialorder %v783, 8.507059e+37
    %v785 = vand.u32 %v576, 2147483648
    %v786 = vor.u32 1.1754944e-38, %v785
    %v787 = vsel %vm784, %v786, %v782
    %v788 = vmul.f32 1.0, %v787
    %v789 = vrcp.pop %v577
    %v790 = vmul.f32 %v577, %v789
    %v791 = vsub.f32 1.0, %v790
    %v792 = vmul.f32 %v789, %v791
    %v793 = vadd.f32 %v789, %v792
    %vm794 = vweird.f32 %v577
    %vm795 = vweird.f32 %v789
    %vm796 = vmor %vm794, %vm795
    %v797 = vsel %vm796, %v789, %v793
    %v798 = vand.u32 2147483647, %v577
    %vm799 = vcmp.eq.f32.partialorder %v798, 8.507059e+37
    %v800 = vand.u32 %v577, 2147483648
    %v801 = vor.u32 1.1754944e-38, %v800
    %v802 = vsel %vm799, %v801, %v797
    %v803 = vmul.f32 1.0, %v802
    %v804 = vrcp.pop %v578
    %v805 = vmul.f32 %v578, %v804
    %v806 = vsub.f32 1.0, %v805
    %v807 = vmul.f32 %v804, %v806
    %v808 = vadd.f32 %v804, %v807
    %vm809 = vweird.f32 %v578
    %vm810 = vweird.f32 %v804
    %vm811 = vmor %vm809, %vm810
    %v812 = vsel %vm811, %v804, %v808
    %v813 = vand.u32 2147483647, %v578
    %vm814 = vcmp.eq.f32.partialorder %v813, 8.507059e+37
    %v815 = vand.u32 %v578, 2147483648
    %v816 = vor.u32 1.1754944e-38, %v815
    %v817 = vsel %vm814, %v816, %v812
    %v818 = vmul.f32 1.0, %v817
    %819 = vst [vmem:[%s5] sm:$0xff] %v593
    %820 = vst [vmem:[%s5 + $0x8] sm:$0xff] %v608
    %821 = vst [vmem:[%s5 + $0x10] sm:$0xff] %v623
    %822 = vst [vmem:[%s5 + $0x18] sm:$0xff] %v638
    %823 = vst [vmem:[%s5 + $0x20] sm:$0xff] %v653
    %824 = vst [vmem:[%s5 + $0x28] sm:$0xff] %v668
    %825 = vst [vmem:[%s5 + $0x30] sm:$0xff] %v683
    %826 = vst [vmem:[%s5 + $0x38] sm:$0xff] %v698
    %827 = vst [vmem:[%s5 + $0x40] sm:$0xff] %v713
    %828 = vst [vmem:[%s5 + $0x48] sm:$0xff] %v728
    %829 = vst [vmem:[%s5 + $0x50] sm:$0xff] %v743
    %830 = vst [vmem:[%s5 + $0x58] sm:$0xff] %v758
    %831 = vst [vmem:[%s5 + $0x60] sm:$0xff] %v773
    %832 = vst [vmem:[%s5 + $0x68] sm:$0xff] %v788
    %833 = vst [vmem:[%s5 + $0x70] sm:$0xff] %v803
    %834 = vst [vmem:[%s5 + $0x78] sm:$0xff] %v818
    // Predicated region
    $region30: #{d_forward.5} parent=1 // pred_check
      _
    $region31: #{d_forward.5} parent=1 // pred_check_branch
      %836 = sbr.rel (0) target = $region33
    $region32: #{d_forward.5} parent=1 // pred_region
      _
    $region33: #{d_forward.5} parent=1 // pred_fallthru
      _
    // Predicated region
    $region34: #{d_forward.5} parent=1 // pred_check
      _
    $region35: #{d_forward.5} parent=1 // pred_check_branch
      %838 = sbr.rel (0) target = $region37
    $region36: #{d_forward.5} parent=1 // pred_region
      _
    $region37: #{d_forward.5} parent=1 // pred_fallthru
      _
    %839 = vsyncpa [#allocation3], 1
    %840 = vsyncpa [#allocation5], 1

// kernel: d_forward.3
$region0: #{d_forward.3}
  #allocation0 [shape = 'u32[]', space=smem, size = 0x4, offset = 0x4, fixed_abs, tag = 'smem constant byte address 0x4 - core index']
  #allocation1 [shape = 'u32[72,128]{1,0:T(1,128)}', space=vmem, size = 0x9000, scoped, tag = 'internal scratch']
  %s0 = inlined_call_operand.vmem [shape: bf16[128,256], index: 0, kind: input, shape index: {}]
  %s1 = inlined_call_operand.hbm [shape: bf16[256,256], index: 1, kind: input, shape index: {}]
  %s2 = inlined_call_operand.hbm [shape: bf16[256,256], index: 2, kind: input, shape index: {}]
  %s3 = inlined_call_operand.vmem [shape: bf16[256,128], index: 3, kind: input, shape index: {}]
  %s4 = inlined_call_operand.vmem [shape: f32[1,512], index: 4, kind: input, shape index: {}]
  %s5 = inlined_call_operand.vmem [shape: bf16[128,128], index: 5, kind: output, shape index: {}]
  %s6 = sld [smem:[#allocation0]]
  $region38: #{d_forward.3} parent=0
    _
  %s8 = ssub.s32 1, %s6
  %s9 = scalar_select 0, %s8, %s6
  $region1: #{d_forward.3} parent=0
    #allocation2 [shape = 'u8[131072]{0}', space=vmem, size = 0x20000, scoped, tag = 'input window, operand 1, single buffered']
    #allocation3 [shape = 's32[1]{0}', space=sflag, size = 0x4, scoped, tag = 'scoped memory for d_forward.3']
    #allocation4 [shape = 'u8[131072]{0}', space=vmem, size = 0x20000, scoped, tag = 'input window, operand 2, single buffered']
    #allocation5 [shape = 's32[1]{0}', space=sflag, size = 0x4, scoped, tag = 'scoped memory for d_forward.3']
    %10 = vsyncpa [#allocation3], 0
    %11 = vsyncpa [#allocation5], 0
    // Predicated region
    $region2: #{d_forward.3} parent=1 // pred_check
      _
    $region3: #{d_forward.3} parent=1 // pred_check_branch
      %13 = sbr.rel (0) target = $region5
    $region4: #{d_forward.3} parent=1 // pred_region
      _
    $region5: #{d_forward.3} parent=1 // pred_fallthru
      _
    // Predicated region
    $region6: #{d_forward.3} parent=1 // pred_check
      _
    $region7: #{d_forward.3} parent=1 // pred_check_branch
      %15 = sbr.rel (0) target = $region9
    $region8: #{d_forward.3} parent=1 // pred_region
      %17 = vsyncadd [#allocation3], 0
      %s18 = sshll.u32 %s1, 4
      %s19 = int_to_ptr.hbm [resolvable:$true] %s18
      %s20 = sshll.u32 [#allocation2], 4
      %s21 = int_to_ptr.vmem [resolvable:$true] %s20
      %26 = dma.hbm_to_vmem [thread:$0]  %s19, 4096, %s21, [#allocation3], 128, 128, 8
    $region9: #{d_forward.3} parent=1 // pred_fallthru
      _
    // Predicated region
    $region10: #{d_forward.3} parent=1 // pred_check
      _
    $region11: #{d_forward.3} parent=1 // pred_check_branch
      %28 = sbr.rel (0) target = $region13
    $region12: #{d_forward.3} parent=1 // pred_region
      %30 = vsyncadd [#allocation5], 0
      %s31 = sshll.u32 %s2, 4
      %s32 = int_to_ptr.hbm [resolvable:$true] %s31
      %s33 = sshll.u32 [#allocation4], 4
      %s34 = int_to_ptr.vmem [resolvable:$true] %s33
      %39 = dma.hbm_to_vmem [thread:$0]  %s32, 4096, %s34, [#allocation5], 128, 128, 8
    $region13: #{d_forward.3} parent=1 // pred_fallthru
      _
    // Predicated region
    $region14: #{d_forward.3} parent=1 // pred_check
      _
    $region15: #{d_forward.3} parent=1 // pred_check_branch
      %41 = sbr.rel (0) target = $region17
    $region16: #{d_forward.3} parent=1 // pred_region
      _
    $region17: #{d_forward.3} parent=1 // pred_fallthru
      _
    // Predicated region
    $region18: #{d_forward.3} parent=1 // pred_check
      _
    $region19: #{d_forward.3} parent=1 // pred_check_branch
      %43 = sbr.rel (0) target = $region21
    $region20: #{d_forward.3} parent=1 // pred_region
      _
    $region21: #{d_forward.3} parent=1 // pred_fallthru
      _
    // Predicated region
    $region22: #{d_forward.3} parent=1 // pred_check
      _
    $region23: #{d_forward.3} parent=1 // pred_check_branch
      %45 = sbr.rel (0) target = $region25
    $region24: #{d_forward.3} parent=1 // pred_region
      %47 = dma.done [#allocation3], 4096
    $region25: #{d_forward.3} parent=1 // pred_fallthru
      _
    // Predicated region
    $region26: #{d_forward.3} parent=1 // pred_check
      _
    $region27: #{d_forward.3} parent=1 // pred_check_branch
      %49 = sbr.rel (0) target = $region29
    $region28: #{d_forward.3} parent=1 // pred_region
      %51 = dma.done [#allocation5], 4096
    $region29: #{d_forward.3} parent=1 // pred_fallthru
      _
    %v52 = vld [vmem:[%s4] sm:$0x3]
    %v53 = vld [vmem:[%s4 + $0x2] sm:$0x3]
    %v54 = vld [vmem:[%s0] sm:$0xff]
    %v55 = vld [vmem:[%s0 + $0x8] sm:$0xff]
    %v56 = vld [vmem:[%s0 + $0x10] sm:$0xff]
    %v57 = vld [vmem:[%s0 + $0x18] sm:$0xff]
    %v58 = vld [vmem:[%s0 + $0x20] sm:$0xff]
    %v59 = vld [vmem:[%s0 + $0x28] sm:$0xff]
    %v60 = vld [vmem:[%s0 + $0x30] sm:$0xff]
    %v61 = vld [vmem:[%s0 + $0x38] sm:$0xff]
    %v62 = vld [vmem:[%s0 + $0x40] sm:$0xff]
    %v63 = vld [vmem:[%s0 + $0x48] sm:$0xff]
    %v64 = vld [vmem:[%s0 + $0x50] sm:$0xff]
    %v65 = vld [vmem:[%s0 + $0x58] sm:$0xff]
    %v66 = vld [vmem:[%s0 + $0x60] sm:$0xff]
    %v67 = vld [vmem:[%s0 + $0x68] sm:$0xff]
    %v68 = vld [vmem:[%s0 + $0x70] sm:$0xff]
    %v69 = vld [vmem:[%s0 + $0x78] sm:$0xff]
    %v70 = vld [vmem:[#allocation2] sm:$0xff]
    %v71 = vld [vmem:[#allocation2 + $0x8] sm:$0xff]
    %v72 = vld [vmem:[#allocation2 + $0x10] sm:$0xff]
    %v73 = vld [vmem:[#allocation2 + $0x18] sm:$0xff]
    %v74 = vld [vmem:[#allocation2 + $0x20] sm:$0xff]
    %v75 = vld [vmem:[#allocation2 + $0x28] sm:$0xff]
    %v76 = vld [vmem:[#allocation2 + $0x30] sm:$0xff]
    %v77 = vld [vmem:[#allocation2 + $0x38] sm:$0xff]
    %v78 = vld [vmem:[#allocation2 + $0x40] sm:$0xff]
    %v79 = vld [vmem:[#allocation2 + $0x48] sm:$0xff]
    %v80 = vld [vmem:[#allocation2 + $0x50] sm:$0xff]
    %v81 = vld [vmem:[#allocation2 + $0x58] sm:$0xff]
    %v82 = vld [vmem:[#allocation2 + $0x60] sm:$0xff]
    %v83 = vld [vmem:[#allocation2 + $0x68] sm:$0xff]
    %v84 = vld [vmem:[#allocation2 + $0x70] sm:$0xff]
    %v85 = vld [vmem:[#allocation2 + $0x78] sm:$0xff]
    %v86 = vld [vmem:[#allocation2 + $0x80] sm:$0xff]
    %v87 = vld [vmem:[#allocation2 + $0x88] sm:$0xff]
    %v88 = vld [vmem:[#allocation2 + $0x90] sm:$0xff]
    %v89 = vld [vmem:[#allocation2 + $0x98] sm:$0xff]
    %v90 = vld [vmem:[#allocation2 + $0xa0] sm:$0xff]
    %v91 = vld [vmem:[#allocation2 + $0xa8] sm:$0xff]
    %v92 = vld [vmem:[#allocation2 + $0xb0] sm:$0xff]
    %v93 = vld [vmem:[#allocation2 + $0xb8] sm:$0xff]
    %v94 = vld [vmem:[#allocation2 + $0xc0] sm:$0xff]
    %v95 = vld [vmem:[#allocation2 + $0xc8] sm:$0xff]
    %v96 = vld [vmem:[#allocation2 + $0xd0] sm:$0xff]
    %v97 = vld [vmem:[#allocation2 + $0xd8] sm:$0xff]
    %v98 = vld [vmem:[#allocation2 + $0xe0] sm:$0xff]
    %v99 = vld [vmem:[#allocation2 + $0xe8] sm:$0xff]
    %v100 = vld [vmem:[#allocation2 + $0xf0] sm:$0xff]
    %v101 = vld [vmem:[#allocation2 + $0xf8] sm:$0xff]
    %v103 = vperm.slane %v52, 0
    %v104 = vperm.slane %v52, 1
    %v123 = vunpack.c.l.b16 %v54
    %v124 = vunpack.c.h.b16 %v54
    %v125 = vunpack.c.l.b16 %v55
    %v126 = vunpack.c.h.b16 %v55
    %v127 = vunpack.c.l.b16 %v56
    %v128 = vunpack.c.h.b16 %v56
    %v129 = vunpack.c.l.b16 %v57
    %v130 = vunpack.c.h.b16 %v57
    %v131 = vunpack.c.l.b16 %v58
    %v132 = vunpack.c.h.b16 %v58
    %v133 = vunpack.c.l.b16 %v59
    %v134 = vunpack.c.h.b16 %v59
    %v135 = vunpack.c.l.b16 %v60
    %v136 = vunpack.c.h.b16 %v60
    %v137 = vunpack.c.l.b16 %v61
    %v138 = vunpack.c.h.b16 %v61
    %v139 = vunpack.c.l.b16 %v62
    %v140 = vunpack.c.h.b16 %v62
    %v141 = vunpack.c.l.b16 %v63
    %v142 = vunpack.c.h.b16 %v63
    %v143 = vunpack.c.l.b16 %v64
    %v144 = vunpack.c.h.b16 %v64
    %v145 = vunpack.c.l.b16 %v65
    %v146 = vunpack.c.h.b16 %v65
    %v147 = vunpack.c.l.b16 %v66
    %v148 = vunpack.c.h.b16 %v66
    %v149 = vunpack.c.l.b16 %v67
    %v150 = vunpack.c.h.b16 %v67
    %v151 = vunpack.c.l.b16 %v68
    %v152 = vunpack.c.h.b16 %v68
    %v153 = vunpack.c.l.b16 %v69
    %v154 = vunpack.c.h.b16 %v69
    %v155 = vpack.c.b16 %v125, %v123
    %v156 = vpack.c.b16 %v126, %v124
    %v157 = vpack.c.b16 %v129, %v127
    %v158 = vpack.c.b16 %v130, %v128
    %v159 = vpack.c.b16 %v133, %v131
    %v160 = vpack.c.b16 %v134, %v132
    %v161 = vpack.c.b16 %v137, %v135
    %v162 = vpack.c.b16 %v138, %v136
    %v163 = vpack.c.b16 %v141, %v139
    %v164 = vpack.c.b16 %v142, %v140
    %v165 = vpack.c.b16 %v145, %v143
    %v166 = vpack.c.b16 %v146, %v144
    %v167 = vpack.c.b16 %v149, %v147
    %v168 = vpack.c.b16 %v150, %v148
    %v169 = vpack.c.b16 %v153, %v151
    %v170 = vpack.c.b16 %v154, %v152
    %v219 = vunpack.c.l.b16 %v70
    %v220 = vunpack.c.h.b16 %v70
    %v221 = vunpack.c.l.b16 %v71
    %v222 = vunpack.c.h.b16 %v71
    %v223 = vunpack.c.l.b16 %v72
    %v224 = vunpack.c.h.b16 %v72
    %v225 = vunpack.c.l.b16 %v73
    %v226 = vunpack.c.h.b16 %v73
    %v227 = vunpack.c.l.b16 %v74
    %v228 = vunpack.c.h.b16 %v74
    %v229 = vunpack.c.l.b16 %v75
    %v230 = vunpack.c.h.b16 %v75
    %v231 = vunpack.c.l.b16 %v76
    %v232 = vunpack.c.h.b16 %v76
    %v233 = vunpack.c.l.b16 %v77
    %v234 = vunpack.c.h.b16 %v77
    %v235 = vunpack.c.l.b16 %v78
    %v236 = vunpack.c.h.b16 %v78
    %v237 = vunpack.c.l.b16 %v79
    %v238 = vunpack.c.h.b16 %v79
    %v239 = vunpack.c.l.b16 %v80
    %v240 = vunpack.c.h.b16 %v80
    %v241 = vunpack.c.l.b16 %v81
    %v242 = vunpack.c.h.b16 %v81
    %v243 = vunpack.c.l.b16 %v82
    %v244 = vunpack.c.h.b16 %v82
    %v245 = vunpack.c.l.b16 %v83
    %v246 = vunpack.c.h.b16 %v83
    %v247 = vunpack.c.l.b16 %v84
    %v248 = vunpack.c.h.b16 %v84
    %v249 = vunpack.c.l.b16 %v85
    %v250 = vunpack.c.h.b16 %v85
    %v251 = vunpack.c.l.b16 %v86
    %v252 = vunpack.c.h.b16 %v86
    %v253 = vunpack.c.l.b16 %v87
    %v254 = vunpack.c.h.b16 %v87
    %v255 = vunpack.c.l.b16 %v88
    %v256 = vunpack.c.h.b16 %v88
    %v257 = vunpack.c.l.b16 %v89
    %v258 = vunpack.c.h.b16 %v89
    %v259 = vunpack.c.l.b16 %v90
    %v260 = vunpack.c.h.b16 %v90
    %v261 = vunpack.c.l.b16 %v91
    %v262 = vunpack.c.h.b16 %v91
    %v263 = vunpack.c.l.b16 %v92
    %v264 = vunpack.c.h.b16 %v92
    %v265 = vunpack.c.l.b16 %v93
    %v266 = vunpack.c.h.b16 %v93
    %v267 = vunpack.c.l.b16 %v94
    %v268 = vunpack.c.h.b16 %v94
    %v269 = vunpack.c.l.b16 %v95
    %v270 = vunpack.c.h.b16 %v95
    %v271 = vunpack.c.l.b16 %v96
    %v272 = vunpack.c.h.b16 %v96
    %v273 = vunpack.c.l.b16 %v97
    %v274 = vunpack.c.h.b16 %v97
    %v275 = vunpack.c.l.b16 %v98
    %v276 = vunpack.c.h.b16 %v98
    %v277 = vunpack.c.l.b16 %v99
    %v278 = vunpack.c.h.b16 %v99
    %v279 = vunpack.c.l.b16 %v100
    %v280 = vunpack.c.h.b16 %v100
    %v281 = vunpack.c.l.b16 %v101
    %v282 = vunpack.c.h.b16 %v101
    %v283 = vpack.c.b16 %v221, %v219
    %v284 = vpack.c.b16 %v222, %v220
    %v285 = vpack.c.b16 %v225, %v223
    %v286 = vpack.c.b16 %v226, %v224
    %v287 = vpack.c.b16 %v229, %v227
    %v288 = vpack.c.b16 %v230, %v228
    %v289 = vpack.c.b16 %v233, %v231
    %v290 = vpack.c.b16 %v234, %v232
    %v291 = vpack.c.b16 %v237, %v235
    %v292 = vpack.c.b16 %v238, %v236
    %v293 = vpack.c.b16 %v241, %v239
    %v294 = vpack.c.b16 %v242, %v240
    %v295 = vpack.c.b16 %v245, %v243
    %v296 = vpack.c.b16 %v246, %v244
    %v297 = vpack.c.b16 %v249, %v247
    %v298 = vpack.c.b16 %v250, %v248
    %v299 = vpack.c.b16 %v253, %v251
    %v300 = vpack.c.b16 %v254, %v252
    %v301 = vpack.c.b16 %v257, %v255
    %v302 = vpack.c.b16 %v258, %v256
    %v303 = vpack.c.b16 %v261, %v259
    %v304 = vpack.c.b16 %v262, %v260
    %v305 = vpack.c.b16 %v265, %v263
    %v306 = vpack.c.b16 %v266, %v264
    %v307 = vpack.c.b16 %v269, %v267
    %v308 = vpack.c.b16 %v270, %v268
    %v309 = vpack.c.b16 %v273, %v271
    %v310 = vpack.c.b16 %v274, %v272
    %v311 = vpack.c.b16 %v277, %v275
    %v312 = vpack.c.b16 %v278, %v276
    %v313 = vpack.c.b16 %v281, %v279
    %v314 = vpack.c.b16 %v282, %v280
    %347 = vmatpush.bf16.msra.mxu0 %v297
    %348 = vmatpush.bf16.msra.mxu0 %v295
    %349 = vmatpush.bf16.msra.mxu0 %v293
    %350 = vmatpush.bf16.msra.mxu0 %v291
    %351 = vmatpush.bf16.msra.mxu0 %v289
    %352 = vmatpush.bf16.msra.mxu0 %v287
    %353 = vmatpush.bf16.msra.mxu0 %v285
    %354 = vmatpush.bf16.msra.mxu0 %v283
    %355 = vmatmul.bf16.gmra.mxu0 %v155
    %v356 = vpop.f32.mrf.mxu0
    %v357 = vadd.f32 %v103, %v356
    %v358 = vpop.f32.mrf.mxu0
    %v359 = vadd.f32 %v103, %v358
    %360 = vmatmul.bf16.gmra.mxu0 %v157
    %v361 = vpop.f32.mrf.mxu0
    %v362 = vadd.f32 %v103, %v361
    %v363 = vpop.f32.mrf.mxu0
    %v364 = vadd.f32 %v103, %v363
    %365 = vmatmul.bf16.gmra.mxu0 %v159
    %v366 = vpop.f32.mrf.mxu0
    %v367 = vadd.f32 %v103, %v366
    %v368 = vpop.f32.mrf.mxu0
    %v369 = vadd.f32 %v103, %v368
    %370 = vmatmul.bf16.gmra.mxu0 %v161
    %v371 = vpop.f32.mrf.mxu0
    %v372 = vadd.f32 %v103, %v371
    %v373 = vpop.f32.mrf.mxu0
    %v374 = vadd.f32 %v103, %v373
    %375 = vmatmul.bf16.gmra.mxu0 %v163
    %v376 = vpop.f32.mrf.mxu0
    %v377 = vadd.f32 %v103, %v376
    %v378 = vpop.f32.mrf.mxu0
    %v379 = vadd.f32 %v103, %v378
    %380 = vmatmul.bf16.gmra.mxu0 %v165
    %v381 = vpop.f32.mrf.mxu0
    %v382 = vadd.f32 %v103, %v381
    %v383 = vpop.f32.mrf.mxu0
    %v384 = vadd.f32 %v103, %v383
    %385 = vmatmul.bf16.gmra.mxu0 %v167
    %v386 = vpop.f32.mrf.mxu0
    %v387 = vadd.f32 %v103, %v386
    %v388 = vpop.f32.mrf.mxu0
    %v389 = vadd.f32 %v103, %v388
    %390 = vmatmul.bf16.gmra.mxu0 %v169
    %v391 = vpop.f32.mrf.mxu0
    %v392 = vadd.f32 %v103, %v391
    %v393 = vpop.f32.mrf.mxu0
    %v394 = vadd.f32 %v103, %v393
    %395 = vdwg.mxu0
    %396 = vmatpush.bf16.msra.mxu0 %v313
    %397 = vmatpush.bf16.msra.mxu0 %v311
    %398 = vmatpush.bf16.msra.mxu0 %v309
    %399 = vmatpush.bf16.msra.mxu0 %v307
    %400 = vmatpush.bf16.msra.mxu0 %v305
    %401 = vmatpush.bf16.msra.mxu0 %v303
    %402 = vmatpush.bf16.msra.mxu0 %v301
    %403 = vmatpush.bf16.msra.mxu0 %v299
    %404 = vmatmul.bf16.gmra.mxu0 %v156
    %v405 = vpop.f32.mrf.mxu0
    %v406 = vadd.f32 %v357, %v405
    %v407 = vpop.f32.mrf.mxu0
    %v408 = vadd.f32 %v359, %v407
    %409 = vmatmul.bf16.gmra.mxu0 %v158
    %v410 = vpop.f32.mrf.mxu0
    %v411 = vadd.f32 %v362, %v410
    %v412 = vpop.f32.mrf.mxu0
    %v413 = vadd.f32 %v364, %v412
    %414 = vmatmul.bf16.gmra.mxu0 %v160
    %v415 = vpop.f32.mrf.mxu0
    %v416 = vadd.f32 %v367, %v415
    %v417 = vpop.f32.mrf.mxu0
    %v418 = vadd.f32 %v369, %v417
    %419 = vmatmul.bf16.gmra.mxu0 %v162
    %v420 = vpop.f32.mrf.mxu0
    %v421 = vadd.f32 %v372, %v420
    %v422 = vpop.f32.mrf.mxu0
    %v423 = vadd.f32 %v374, %v422
    %424 = vmatmul.bf16.gmra.mxu0 %v164
    %v425 = vpop.f32.mrf.mxu0
    %v426 = vadd.f32 %v377, %v425
    %v427 = vpop.f32.mrf.mxu0
    %v428 = vadd.f32 %v379, %v427
    %429 = vmatmul.bf16.gmra.mxu0 %v166
    %v430 = vpop.f32.mrf.mxu0
    %v431 = vadd.f32 %v382, %v430
    %v432 = vpop.f32.mrf.mxu0
    %v433 = vadd.f32 %v384, %v432
    %434 = vmatmul.bf16.gmra.mxu0 %v168
    %v435 = vpop.f32.mrf.mxu0
    %v436 = vadd.f32 %v387, %v435
    %v437 = vpop.f32.mrf.mxu0
    %v438 = vadd.f32 %v389, %v437
    %439 = vmatmul.bf16.gmra.mxu0 %v170
    %v440 = vpop.f32.mrf.mxu0
    %v441 = vadd.f32 %v392, %v440
    %v442 = vpop.f32.mrf.mxu0
    %v443 = vadd.f32 %v394, %v442
    %444 = vdwg.mxu0
    %445 = vmatpush.bf16.msra.mxu0 %v298
    %446 = vmatpush.bf16.msra.mxu0 %v296
    %447 = vmatpush.bf16.msra.mxu0 %v294
    %448 = vmatpush.bf16.msra.mxu0 %v292
    %449 = vmatpush.bf16.msra.mxu0 %v290
    %450 = vmatpush.bf16.msra.mxu0 %v288
    %451 = vmatpush.bf16.msra.mxu0 %v286
    %452 = vmatpush.bf16.msra.mxu0 %v284
    %453 = vmatmul.bf16.gmra.mxu0 %v155
    %v454 = vpop.f32.mrf.mxu0
    %v455 = vadd.f32 %v104, %v454
    %v456 = vpop.f32.mrf.mxu0
    %v457 = vadd.f32 %v104, %v456
    %458 = vmatmul.bf16.gmra.mxu0 %v157
    %v459 = vpop.f32.mrf.mxu0
    %v460 = vadd.f32 %v104, %v459
    %v461 = vpop.f32.mrf.mxu0
    %v462 = vadd.f32 %v104, %v461
    %463 = vmatmul.bf16.gmra.mxu0 %v159
    %v464 = vpop.f32.mrf.mxu0
    %v465 = vadd.f32 %v104, %v464
    %v466 = vpop.f32.mrf.mxu0
    %v467 = vadd.f32 %v104, %v466
    %468 = vmatmul.bf16.gmra.mxu0 %v161
    %v469 = vpop.f32.mrf.mxu0
    %v470 = vadd.f32 %v104, %v469
    %v471 = vpop.f32.mrf.mxu0
    %v472 = vadd.f32 %v104, %v471
    %473 = vmatmul.bf16.gmra.mxu0 %v163
    %v474 = vpop.f32.mrf.mxu0
    %v475 = vadd.f32 %v104, %v474
    %v476 = vpop.f32.mrf.mxu0
    %v477 = vadd.f32 %v104, %v476
    %478 = vmatmul.bf16.gmra.mxu0 %v165
    %v479 = vpop.f32.mrf.mxu0
    %v480 = vadd.f32 %v104, %v479
    %v481 = vpop.f32.mrf.mxu0
    %v482 = vadd.f32 %v104, %v481
    %483 = vmatmul.bf16.gmra.mxu0 %v167
    %v484 = vpop.f32.mrf.mxu0
    %v485 = vadd.f32 %v104, %v484
    %v486 = vpop.f32.mrf.mxu0
    %v487 = vadd.f32 %v104, %v486
    %488 = vmatmul.bf16.gmra.mxu0 %v169
    %v489 = vpop.f32.mrf.mxu0
    %v490 = vadd.f32 %v104, %v489
    %v491 = vpop.f32.mrf.mxu0
    %v492 = vadd.f32 %v104, %v491
    %493 = vdwg.mxu0
    %494 = vmatpush.bf16.msra.mxu0 %v314
    %495 = vmatpush.bf16.msra.mxu0 %v312
    %496 = vmatpush.bf16.msra.mxu0 %v310
    %497 = vmatpush.bf16.msra.mxu0 %v308
    %498 = vmatpush.bf16.msra.mxu0 %v306
    %499 = vmatpush.bf16.msra.mxu0 %v304
    %500 = vmatpush.bf16.msra.mxu0 %v302
    %501 = vmatpush.bf16.msra.mxu0 %v300
    %502 = vmatmul.bf16.gmra.mxu0 %v156
    %v503 = vpop.f32.mrf.mxu0
    %v504 = vadd.f32 %v455, %v503
    %v505 = vpop.f32.mrf.mxu0
    %v506 = vadd.f32 %v457, %v505
    %507 = vmatmul.bf16.gmra.mxu0 %v158
    %v508 = vpop.f32.mrf.mxu0
    %v509 = vadd.f32 %v460, %v508
    %v510 = vpop.f32.mrf.mxu0
    %v511 = vadd.f32 %v462, %v510
    %512 = vmatmul.bf16.gmra.mxu0 %v160
    %v513 = vpop.f32.mrf.mxu0
    %v514 = vadd.f32 %v465, %v513
    %v515 = vpop.f32.mrf.mxu0
    %v516 = vadd.f32 %v467, %v515
    %517 = vmatmul.bf16.gmra.mxu0 %v162
    %v518 = vpop.f32.mrf.mxu0
    %v519 = vadd.f32 %v470, %v518
    %v520 = vpop.f32.mrf.mxu0
    %v521 = vadd.f32 %v472, %v520
    %522 = vmatmul.bf16.gmra.mxu0 %v164
    %v523 = vpop.f32.mrf.mxu0
    %v524 = vadd.f32 %v475, %v523
    %v525 = vpop.f32.mrf.mxu0
    %v526 = vadd.f32 %v477, %v525
    %527 = vmatmul.bf16.gmra.mxu0 %v166
    %v528 = vpop.f32.mrf.mxu0
    %v529 = vadd.f32 %v480, %v528
    %v530 = vpop.f32.mrf.mxu0
    %v531 = vadd.f32 %v482, %v530
    %532 = vmatmul.bf16.gmra.mxu0 %v168
    %v533 = vpop.f32.mrf.mxu0
    %v534 = vadd.f32 %v485, %v533
    %v535 = vpop.f32.mrf.mxu0
    %v536 = vadd.f32 %v487, %v535
    %537 = vmatmul.bf16.gmra.mxu0 %v170
    %v538 = vpop.f32.mrf.mxu0
    %v539 = vadd.f32 %v490, %v538
    %v540 = vpop.f32.mrf.mxu0
    %v541 = vadd.f32 %v492, %v540
    %542 = vdwg.mxu0
    %v543 = vmax.f32 %v406, 0.0
    %v544 = vmax.f32 %v504, 0.0
    %v545 = vmax.f32 %v408, 0.0
    %v546 = vmax.f32 %v506, 0.0
    %v547 = vmax.f32 %v411, 0.0
    %v548 = vmax.f32 %v509, 0.0
    %v549 = vmax.f32 %v413, 0.0
    %v550 = vmax.f32 %v511, 0.0
    %v551 = vmax.f32 %v416, 0.0
    %v552 = vmax.f32 %v514, 0.0
    %v553 = vmax.f32 %v418, 0.0
    %v554 = vmax.f32 %v516, 0.0
    %v555 = vmax.f32 %v421, 0.0
    %v556 = vmax.f32 %v519, 0.0
    %v557 = vmax.f32 %v423, 0.0
    %v558 = vmax.f32 %v521, 0.0
    %v559 = vmax.f32 %v426, 0.0
    %v560 = vmax.f32 %v524, 0.0
    %v561 = vmax.f32 %v428, 0.0
    %v562 = vmax.f32 %v526, 0.0
    %v563 = vmax.f32 %v431, 0.0
    %v564 = vmax.f32 %v529, 0.0
    %v565 = vmax.f32 %v433, 0.0
    %v566 = vmax.f32 %v531, 0.0
    %v567 = vmax.f32 %v436, 0.0
    %v568 = vmax.f32 %v534, 0.0
    %v569 = vmax.f32 %v438, 0.0
    %v570 = vmax.f32 %v536, 0.0
    %v571 = vmax.f32 %v441, 0.0
    %v572 = vmax.f32 %v539, 0.0
    %v573 = vmax.f32 %v443, 0.0
    %v574 = vmax.f32 %v541, 0.0
    %v575 = vpack.c.bf16 %v545, %v543
    %v576 = vpack.c.bf16 %v546, %v544
    %v577 = vpack.c.bf16 %v549, %v547
    %v578 = vpack.c.bf16 %v550, %v548
    %v579 = vpack.c.bf16 %v553, %v551
    %v580 = vpack.c.bf16 %v554, %v552
    %v581 = vpack.c.bf16 %v557, %v555
    %v582 = vpack.c.bf16 %v558, %v556
    %v583 = vpack.c.bf16 %v561, %v559
    %v584 = vpack.c.bf16 %v562, %v560
    %v585 = vpack.c.bf16 %v565, %v563
    %v586 = vpack.c.bf16 %v566, %v564
    %v587 = vpack.c.bf16 %v569, %v567
    %v588 = vpack.c.bf16 %v570, %v568
    %v589 = vpack.c.bf16 %v573, %v571
    %v590 = vpack.c.bf16 %v574, %v572
    %v591 = vld [vmem:[#allocation4] sm:$0xff]
    %v592 = vld [vmem:[#allocation4 + $0x8] sm:$0xff]
    %v593 = vld [vmem:[#allocation4 + $0x10] sm:$0xff]
    %v594 = vld [vmem:[#allocation4 + $0x18] sm:$0xff]
    %v595 = vld [vmem:[#allocation4 + $0x20] sm:$0xff]
    %v596 = vld [vmem:[#allocation4 + $0x28] sm:$0xff]
    %v597 = vld [vmem:[#allocation4 + $0x30] sm:$0xff]
    %v598 = vld [vmem:[#allocation4 + $0x38] sm:$0xff]
    %v599 = vld [vmem:[#allocation4 + $0x40] sm:$0xff]
    %v600 = vld [vmem:[#allocation4 + $0x48] sm:$0xff]
    %v601 = vld [vmem:[#allocation4 + $0x50] sm:$0xff]
    %v602 = vld [vmem:[#allocation4 + $0x58] sm:$0xff]
    %v603 = vld [vmem:[#allocation4 + $0x60] sm:$0xff]
    %v604 = vld [vmem:[#allocation4 + $0x68] sm:$0xff]
    %v605 = vld [vmem:[#allocation4 + $0x70] sm:$0xff]
    %v606 = vld [vmem:[#allocation4 + $0x78] sm:$0xff]
    %v607 = vld [vmem:[#allocation4 + $0x80] sm:$0xff]
    %v608 = vld [vmem:[#allocation4 + $0x88] sm:$0xff]
    %v609 = vld [vmem:[#allocation4 + $0x90] sm:$0xff]
    %v610 = vld [vmem:[#allocation4 + $0x98] sm:$0xff]
    %v611 = vld [vmem:[#allocation4 + $0xa0] sm:$0xff]
    %v612 = vld [vmem:[#allocation4 + $0xa8] sm:$0xff]
    %v613 = vld [vmem:[#allocation4 + $0xb0] sm:$0xff]
    %v614 = vld [vmem:[#allocation4 + $0xb8] sm:$0xff]
    %v615 = vld [vmem:[#allocation4 + $0xc0] sm:$0xff]
    %v616 = vld [vmem:[#allocation4 + $0xc8] sm:$0xff]
    %v617 = vld [vmem:[#allocation4 + $0xd0] sm:$0xff]
    %v618 = vld [vmem:[#allocation4 + $0xd8] sm:$0xff]
    %v619 = vld [vmem:[#allocation4 + $0xe0] sm:$0xff]
    %v620 = vld [vmem:[#allocation4 + $0xe8] sm:$0xff]
    %v621 = vld [vmem:[#allocation4 + $0xf0] sm:$0xff]
    %v622 = vld [vmem:[#allocation4 + $0xf8] sm:$0xff]
    %v624 = vperm.slane %v53, 0
    %v625 = vperm.slane %v53, 1
    %v660 = vunpack.c.l.b16 %v591
    %v661 = vunpack.c.h.b16 %v591
    %v662 = vunpack.c.l.b16 %v592
    %v663 = vunpack.c.h.b16 %v592
    %v664 = vunpack.c.l.b16 %v593
    %v665 = vunpack.c.h.b16 %v593
    %v666 = vunpack.c.l.b16 %v594
    %v667 = vunpack.c.h.b16 %v594
    %v668 = vunpack.c.l.b16 %v595
    %v669 = vunpack.c.h.b16 %v595
    %v670 = vunpack.c.l.b16 %v596
    %v671 = vunpack.c.h.b16 %v596
    %v672 = vunpack.c.l.b16 %v597
    %v673 = vunpack.c.h.b16 %v597
    %v674 = vunpack.c.l.b16 %v598
    %v675 = vunpack.c.h.b16 %v598
    %v676 = vunpack.c.l.b16 %v599
    %v677 = vunpack.c.h.b16 %v599
    %v678 = vunpack.c.l.b16 %v600
    %v679 = vunpack.c.h.b16 %v600
    %v680 = vunpack.c.l.b16 %v601
    %v681 = vunpack.c.h.b16 %v601
    %v682 = vunpack.c.l.b16 %v602
    %v683 = vunpack.c.h.b16 %v602
    %v684 = vunpack.c.l.b16 %v603
    %v685 = vunpack.c.h.b16 %v603
    %v686 = vunpack.c.l.b16 %v604
    %v687 = vunpack.c.h.b16 %v604
    %v688 = vunpack.c.l.b16 %v605
    %v689 = vunpack.c.h.b16 %v605
    %v690 = vunpack.c.l.b16 %v606
    %v691 = vunpack.c.h.b16 %v606
    %v692 = vunpack.c.l.b16 %v607
    %v693 = vunpack.c.h.b16 %v607
    %v694 = vunpack.c.l.b16 %v608
    %v695 = vunpack.c.h.b16 %v608
    %v696 = vunpack.c.l.b16 %v609
    %v697 = vunpack.c.h.b16 %v609
    %v698 = vunpack.c.l.b16 %v610
    %v699 = vunpack.c.h.b16 %v610
    %v700 = vunpack.c.l.b16 %v611
    %v701 = vunpack.c.h.b16 %v611
    %v702 = vunpack.c.l.b16 %v612
    %v703 = vunpack.c.h.b16 %v612
    %v704 = vunpack.c.l.b16 %v613
    %v705 = vunpack.c.h.b16 %v613
    %v706 = vunpack.c.l.b16 %v614
    %v707 = vunpack.c.h.b16 %v614
    %v708 = vunpack.c.l.b16 %v615
    %v709 = vunpack.c.h.b16 %v615
    %v710 = vunpack.c.l.b16 %v616
    %v711 = vunpack.c.h.b16 %v616
    %v712 = vunpack.c.l.b16 %v617
    %v713 = vunpack.c.h.b16 %v617
    %v714 = vunpack.c.l.b16 %v618
    %v715 = vunpack.c.h.b16 %v618
    %v716 = vunpack.c.l.b16 %v619
    %v717 = vunpack.c.h.b16 %v619
    %v718 = vunpack.c.l.b16 %v620
    %v719 = vunpack.c.h.b16 %v620
    %v720 = vunpack.c.l.b16 %v621
    %v721 = vunpack.c.h.b16 %v621
    %v722 = vunpack.c.l.b16 %v622
    %v723 = vunpack.c.h.b16 %v622
    %v724 = vpack.c.b16 %v662, %v660
    %v725 = vpack.c.b16 %v663, %v661
    %v726 = vpack.c.b16 %v666, %v664
    %v727 = vpack.c.b16 %v667, %v665
    %v728 = vpack.c.b16 %v670, %v668
    %v729 = vpack.c.b16 %v671, %v669
    %v730 = vpack.c.b16 %v674, %v672
    %v731 = vpack.c.b16 %v675, %v673
    %v732 = vpack.c.b16 %v678, %v676
    %v733 = vpack.c.b16 %v679, %v677
    %v734 = vpack.c.b16 %v682, %v680
    %v735 = vpack.c.b16 %v683, %v681
    %v736 = vpack.c.b16 %v686, %v684
    %v737 = vpack.c.b16 %v687, %v685
    %v738 = vpack.c.b16 %v690, %v688
    %v739 = vpack.c.b16 %v691, %v689
    %v740 = vpack.c.b16 %v694, %v692
    %v741 = vpack.c.b16 %v695, %v693
    %v742 = vpack.c.b16 %v698, %v696
    %v743 = vpack.c.b16 %v699, %v697
    %v744 = vpack.c.b16 %v702, %v700
    %v745 = vpack.c.b16 %v703, %v701
    %v746 = vpack.c.b16 %v706, %v704
    %v747 = vpack.c.b16 %v707, %v705
    %v748 = vpack.c.b16 %v710, %v708
    %v749 = vpack.c.b16 %v711, %v709
    %v750 = vpack.c.b16 %v714, %v712
    %v751 = vpack.c.b16 %v715, %v713
    %v752 = vpack.c.b16 %v718, %v716
    %v753 = vpack.c.b16 %v719, %v717
    %v754 = vpack.c.b16 %v722, %v720
    %v755 = vpack.c.b16 %v723, %v721
    %788 = vmatpush.bf16.msra.mxu0 %v738
    %789 = vmatpush.bf16.msra.mxu0 %v736
    %790 = vmatpush.bf16.msra.mxu0 %v734
    %791 = vmatpush.bf16.msra.mxu0 %v732
    %792 = vmatpush.bf16.msra.mxu0 %v730
    %793 = vmatpush.bf16.msra.mxu0 %v728
    %794 = vmatpush.bf16.msra.mxu0 %v726
    %795 = vmatpush.bf16.msra.mxu0 %v724
    %796 = vmatmul.bf16.gmra.mxu0 %v575
    %v797 = vpop.f32.mrf.mxu0
    %v798 = vadd.f32 %v624, %v797
    %v799 = vpop.f32.mrf.mxu0
    %v800 = vadd.f32 %v624, %v799
    %801 = vmatmul.bf16.gmra.mxu0 %v577
    %v802 = vpop.f32.mrf.mxu0
    %v803 = vadd.f32 %v624, %v802
    %v804 = vpop.f32.mrf.mxu0
    %v805 = vadd.f32 %v624, %v804
    %806 = vmatmul.bf16.gmra.mxu0 %v579
    %v807 = vpop.f32.mrf.mxu0
    %v808 = vadd.f32 %v624, %v807
    %v809 = vpop.f32.mrf.mxu0
    %v810 = vadd.f32 %v624, %v809
    %811 = vmatmul.bf16.gmra.mxu0 %v581
    %v812 = vpop.f32.mrf.mxu0
    %v813 = vadd.f32 %v624, %v812
    %v814 = vpop.f32.mrf.mxu0
    %v815 = vadd.f32 %v624, %v814
    %816 = vmatmul.bf16.gmra.mxu0 %v583
    %v817 = vpop.f32.mrf.mxu0
    %v818 = vadd.f32 %v624, %v817
    %v819 = vpop.f32.mrf.mxu0
    %v820 = vadd.f32 %v624, %v819
    %821 = vmatmul.bf16.gmra.mxu0 %v585
    %v822 = vpop.f32.mrf.mxu0
    %v823 = vadd.f32 %v624, %v822
    %v824 = vpop.f32.mrf.mxu0
    %v825 = vadd.f32 %v624, %v824
    %826 = vmatmul.bf16.gmra.mxu0 %v587
    %v827 = vpop.f32.mrf.mxu0
    %v828 = vadd.f32 %v624, %v827
    %v829 = vpop.f32.mrf.mxu0
    %v830 = vadd.f32 %v624, %v829
    %831 = vmatmul.bf16.gmra.mxu0 %v589
    %v832 = vpop.f32.mrf.mxu0
    %v833 = vadd.f32 %v624, %v832
    %v834 = vpop.f32.mrf.mxu0
    %v835 = vadd.f32 %v624, %v834
    %836 = vdwg.mxu0
    %837 = vmatpush.bf16.msra.mxu0 %v754
    %838 = vmatpush.bf16.msra.mxu0 %v752
    %839 = vmatpush.bf16.msra.mxu0 %v750
    %840 = vmatpush.bf16.msra.mxu0 %v748
    %841 = vmatpush.bf16.msra.mxu0 %v746
    %842 = vmatpush.bf16.msra.mxu0 %v744
    %843 = vmatpush.bf16.msra.mxu0 %v742
    %844 = vmatpush.bf16.msra.mxu0 %v740
    %845 = vmatmul.bf16.gmra.mxu0 %v576
    %v846 = vpop.f32.mrf.mxu0
    %v847 = vadd.f32 %v798, %v846
    %v848 = vpop.f32.mrf.mxu0
    %v849 = vadd.f32 %v800, %v848
    %850 = vmatmul.bf16.gmra.mxu0 %v578
    %v851 = vpop.f32.mrf.mxu0
    %v852 = vadd.f32 %v803, %v851
    %v853 = vpop.f32.mrf.mxu0
    %v854 = vadd.f32 %v805, %v853
    %855 = vmatmul.bf16.gmra.mxu0 %v580
    %v856 = vpop.f32.mrf.mxu0
    %v857 = vadd.f32 %v808, %v856
    %v858 = vpop.f32.mrf.mxu0
    %v859 = vadd.f32 %v810, %v858
    %860 = vmatmul.bf16.gmra.mxu0 %v582
    %v861 = vpop.f32.mrf.mxu0
    %v862 = vadd.f32 %v813, %v861
    %v863 = vpop.f32.mrf.mxu0
    %v864 = vadd.f32 %v815, %v863
    %865 = vmatmul.bf16.gmra.mxu0 %v584
    %v866 = vpop.f32.mrf.mxu0
    %v867 = vadd.f32 %v818, %v866
    %v868 = vpop.f32.mrf.mxu0
    %v869 = vadd.f32 %v820, %v868
    %870 = vmatmul.bf16.gmra.mxu0 %v586
    %v871 = vpop.f32.mrf.mxu0
    %v872 = vadd.f32 %v823, %v871
    %v873 = vpop.f32.mrf.mxu0
    %v874 = vadd.f32 %v825, %v873
    %875 = vmatmul.bf16.gmra.mxu0 %v588
    %v876 = vpop.f32.mrf.mxu0
    %v877 = vadd.f32 %v828, %v876
    %v878 = vpop.f32.mrf.mxu0
    %v879 = vadd.f32 %v830, %v878
    %880 = vmatmul.bf16.gmra.mxu0 %v590
    %v881 = vpop.f32.mrf.mxu0
    %v882 = vadd.f32 %v833, %v881
    %v883 = vpop.f32.mrf.mxu0
    %v884 = vadd.f32 %v835, %v883
    %885 = vdwg.mxu0
    %886 = vmatpush.bf16.msra.mxu0 %v739
    %887 = vmatpush.bf16.msra.mxu0 %v737
    %888 = vmatpush.bf16.msra.mxu0 %v735
    %889 = vmatpush.bf16.msra.mxu0 %v733
    %890 = vmatpush.bf16.msra.mxu0 %v731
    %891 = vmatpush.bf16.msra.mxu0 %v729
    %892 = vmatpush.bf16.msra.mxu0 %v727
    %893 = vmatpush.bf16.msra.mxu0 %v725
    %894 = vmatmul.bf16.gmra.mxu0 %v575
    %v895 = vpop.f32.mrf.mxu0
    %v896 = vadd.f32 %v625, %v895
    %v897 = vpop.f32.mrf.mxu0
    %v898 = vadd.f32 %v625, %v897
    %899 = vmatmul.bf16.gmra.mxu0 %v577
    %v900 = vpop.f32.mrf.mxu0
    %v901 = vadd.f32 %v625, %v900
    %v902 = vpop.f32.mrf.mxu0
    %v903 = vadd.f32 %v625, %v902
    %904 = vmatmul.bf16.gmra.mxu0 %v579
    %v905 = vpop.f32.mrf.mxu0
    %v906 = vadd.f32 %v625, %v905
    %v907 = vpop.f32.mrf.mxu0
    %v908 = vadd.f32 %v625, %v907
    %909 = vmatmul.bf16.gmra.mxu0 %v581
    %v910 = vpop.f32.mrf.mxu0
    %v911 = vadd.f32 %v625, %v910
    %v912 = vpop.f32.mrf.mxu0
    %v913 = vadd.f32 %v625, %v912
    %914 = vmatmul.bf16.gmra.mxu0 %v583
    %v915 = vpop.f32.mrf.mxu0
    %v916 = vadd.f32 %v625, %v915
    %v917 = vpop.f32.mrf.mxu0
    %v918 = vadd.f32 %v625, %v917
    %919 = vmatmul.bf16.gmra.mxu0 %v585
    %v920 = vpop.f32.mrf.mxu0
    %v921 = vadd.f32 %v625, %v920
    %v922 = vpop.f32.mrf.mxu0
    %v923 = vadd.f32 %v625, %v922
    %924 = vmatmul.bf16.gmra.mxu0 %v587
    %v925 = vpop.f32.mrf.mxu0
    %v926 = vadd.f32 %v625, %v925
    %v927 = vpop.f32.mrf.mxu0
    %v928 = vadd.f32 %v625, %v927
    %929 = vmatmul.bf16.gmra.mxu0 %v589
    %v930 = vpop.f32.mrf.mxu0
    %v931 = vadd.f32 %v625, %v930
    %v932 = vpop.f32.mrf.mxu0
    %v933 = vadd.f32 %v625, %v932
    %934 = vdwg.mxu0
    %935 = vmatpush.bf16.msra.mxu0 %v755
    %936 = vmatpush.bf16.msra.mxu0 %v753
    %937 = vmatpush.bf16.msra.mxu0 %v751
    %938 = vmatpush.bf16.msra.mxu0 %v749
    %939 = vmatpush.bf16.msra.mxu0 %v747
    %940 = vmatpush.bf16.msra.mxu0 %v745
    %941 = vmatpush.bf16.msra.mxu0 %v743
    %942 = vmatpush.bf16.msra.mxu0 %v741
    %943 = vmatmul.bf16.gmra.mxu0 %v576
    %v944 = vpop.f32.mrf.mxu0
    %v945 = vadd.f32 %v896, %v944
    %v946 = vpop.f32.mrf.mxu0
    %v947 = vadd.f32 %v898, %v946
    %948 = vmatmul.bf16.gmra.mxu0 %v578
    %v949 = vpop.f32.mrf.mxu0
    %v950 = vadd.f32 %v901, %v949
    %v951 = vpop.f32.mrf.mxu0
    %v952 = vadd.f32 %v903, %v951
    %953 = vmatmul.bf16.gmra.mxu0 %v580
    %v954 = vpop.f32.mrf.mxu0
    %v955 = vadd.f32 %v906, %v954
    %v956 = vpop.f32.mrf.mxu0
    %v957 = vadd.f32 %v908, %v956
    %958 = vmatmul.bf16.gmra.mxu0 %v582
    %v959 = vpop.f32.mrf.mxu0
    %v960 = vadd.f32 %v911, %v959
    %v961 = vpop.f32.mrf.mxu0
    %v962 = vadd.f32 %v913, %v961
    %963 = vmatmul.bf16.gmra.mxu0 %v584
    %v964 = vpop.f32.mrf.mxu0
    %v965 = vadd.f32 %v916, %v964
    %v966 = vpop.f32.mrf.mxu0
    %v967 = vadd.f32 %v918, %v966
    %968 = vmatmul.bf16.gmra.mxu0 %v586
    %v969 = vpop.f32.mrf.mxu0
    %v970 = vadd.f32 %v921, %v969
    %v971 = vpop.f32.mrf.mxu0
    %v972 = vadd.f32 %v923, %v971
    %973 = vmatmul.bf16.gmra.mxu0 %v588
    %v974 = vpop.f32.mrf.mxu0
    %v975 = vadd.f32 %v926, %v974
    %v976 = vpop.f32.mrf.mxu0
    %v977 = vadd.f32 %v928, %v976
    %978 = vmatmul.bf16.gmra.mxu0 %v590
    %v979 = vpop.f32.mrf.mxu0
    %v980 = vadd.f32 %v931, %v979
    %v981 = vpop.f32.mrf.mxu0
    %v982 = vadd.f32 %v933, %v981
    %983 = vdwg.mxu0
    %v984 = vmax.f32 %v847, 0.0
    %v985 = vmax.f32 %v945, 0.0
    %v986 = vmax.f32 %v849, 0.0
    %v987 = vmax.f32 %v947, 0.0
    %v988 = vmax.f32 %v852, 0.0
    %v989 = vmax.f32 %v950, 0.0
    %v990 = vmax.f32 %v854, 0.0
    %v991 = vmax.f32 %v952, 0.0
    %v992 = vmax.f32 %v857, 0.0
    %v993 = vmax.f32 %v955, 0.0
    %v994 = vmax.f32 %v859, 0.0
    %v995 = vmax.f32 %v957, 0.0
    %v996 = vmax.f32 %v862, 0.0
    %v997 = vmax.f32 %v960, 0.0
    %v998 = vmax.f32 %v864, 0.0
    %v999 = vmax.f32 %v962, 0.0
    %v1000 = vmax.f32 %v867, 0.0
    %v1001 = vmax.f32 %v965, 0.0
    %v1002 = vmax.f32 %v869, 0.0
    %v1003 = vmax.f32 %v967, 0.0
    %v1004 = vmax.f32 %v872, 0.0
    %v1005 = vmax.f32 %v970, 0.0
    %v1006 = vmax.f32 %v874, 0.0
    %v1007 = vmax.f32 %v972, 0.0
    %v1008 = vmax.f32 %v877, 0.0
    %v1009 = vmax.f32 %v975, 0.0
    %v1010 = vmax.f32 %v879, 0.0
    %v1011 = vmax.f32 %v977, 0.0
    %v1012 = vmax.f32 %v882, 0.0
    %v1013 = vmax.f32 %v980, 0.0
    %v1014 = vmax.f32 %v884, 0.0
    %v1015 = vmax.f32 %v982, 0.0
    %v1016 = vpack.c.bf16 %v986, %v984
    %v1017 = vpack.c.bf16 %v987, %v985
    %v1018 = vpack.c.bf16 %v990, %v988
    %v1019 = vpack.c.bf16 %v991, %v989
    %v1020 = vpack.c.bf16 %v994, %v992
    %v1021 = vpack.c.bf16 %v995, %v993
    %v1022 = vpack.c.bf16 %v998, %v996
    %v1023 = vpack.c.bf16 %v999, %v997
    %v1024 = vpack.c.bf16 %v1002, %v1000
    %v1025 = vpack.c.bf16 %v1003, %v1001
    %v1026 = vpack.c.bf16 %v1006, %v1004
    %v1027 = vpack.c.bf16 %v1007, %v1005
    %v1028 = vpack.c.bf16 %v1010, %v1008
    %v1029 = vpack.c.bf16 %v1011, %v1009
    %v1030 = vpack.c.bf16 %v1014, %v1012
    %v1031 = vpack.c.bf16 %v1015, %v1013
    %v1032 = vld [vmem:[%s3] sm:$0xf]
    %v1033 = vld [vmem:[%s3 + $0x4] sm:$0xf]
    %v1034 = vld [vmem:[%s3 + $0x8] sm:$0xf]
    %v1035 = vld [vmem:[%s3 + $0xc] sm:$0xf]
    %v1036 = vld [vmem:[%s3 + $0x10] sm:$0xf]
    %v1037 = vld [vmem:[%s3 + $0x14] sm:$0xf]
    %v1038 = vld [vmem:[%s3 + $0x18] sm:$0xf]
    %v1039 = vld [vmem:[%s3 + $0x1c] sm:$0xf]
    %v1040 = vld [vmem:[%s3 + $0x20] sm:$0xf]
    %v1041 = vld [vmem:[%s3 + $0x24] sm:$0xf]
    %v1042 = vld [vmem:[%s3 + $0x28] sm:$0xf]
    %v1043 = vld [vmem:[%s3 + $0x2c] sm:$0xf]
    %v1044 = vld [vmem:[%s3 + $0x30] sm:$0xf]
    %v1045 = vld [vmem:[%s3 + $0x34] sm:$0xf]
    %v1046 = vld [vmem:[%s3 + $0x38] sm:$0xf]
    %v1047 = vld [vmem:[%s3 + $0x3c] sm:$0xf]
    %v1048 = vld [vmem:[%s3 + $0x40] sm:$0xf]
    %v1049 = vld [vmem:[%s3 + $0x44] sm:$0xf]
    %v1050 = vld [vmem:[%s3 + $0x48] sm:$0xf]
    %v1051 = vld [vmem:[%s3 + $0x4c] sm:$0xf]
    %v1052 = vld [vmem:[%s3 + $0x50] sm:$0xf]
    %v1053 = vld [vmem:[%s3 + $0x54] sm:$0xf]
    %v1054 = vld [vmem:[%s3 + $0x58] sm:$0xf]
    %v1055 = vld [vmem:[%s3 + $0x5c] sm:$0xf]
    %v1056 = vld [vmem:[%s3 + $0x60] sm:$0xf]
    %v1057 = vld [vmem:[%s3 + $0x64] sm:$0xf]
    %v1058 = vld [vmem:[%s3 + $0x68] sm:$0xf]
    %v1059 = vld [vmem:[%s3 + $0x6c] sm:$0xf]
    %v1060 = vld [vmem:[%s3 + $0x70] sm:$0xf]
    %v1061 = vld [vmem:[%s3 + $0x74] sm:$0xf]
    %v1062 = vld [vmem:[%s3 + $0x78] sm:$0xf]
    %v1063 = vld [vmem:[%s3 + $0x7c] sm:$0xf]
    %v1096 = vunpack.c.l.b16 %v1032
    %v1097 = vunpack.c.l.b16 %v1033
    %v1098 = vunpack.c.l.b16 %v1034
    %v1099 = vunpack.c.l.b16 %v1035
    %v1100 = vunpack.c.l.b16 %v1036
    %v1101 = vunpack.c.l.b16 %v1037
    %v1102 = vunpack.c.l.b16 %v1038
    %v1103 = vunpack.c.l.b16 %v1039
    %v1104 = vunpack.c.l.b16 %v1040
    %v1105 = vunpack.c.l.b16 %v1041
    %v1106 = vunpack.c.l.b16 %v1042
    %v1107 = vunpack.c.l.b16 %v1043
    %v1108 = vunpack.c.l.b16 %v1044
    %v1109 = vunpack.c.l.b16 %v1045
    %v1110 = vunpack.c.l.b16 %v1046
    %v1111 = vunpack.c.l.b16 %v1047
    %v1112 = vunpack.c.l.b16 %v1048
    %v1113 = vunpack.c.l.b16 %v1049
    %v1114 = vunpack.c.l.b16 %v1050
    %v1115 = vunpack.c.l.b16 %v1051
    %v1116 = vunpack.c.l.b16 %v1052
    %v1117 = vunpack.c.l.b16 %v1053
    %v1118 = vunpack.c.l.b16 %v1054
    %v1119 = vunpack.c.l.b16 %v1055
    %v1120 = vunpack.c.l.b16 %v1056
    %v1121 = vunpack.c.l.b16 %v1057
    %v1122 = vunpack.c.l.b16 %v1058
    %v1123 = vunpack.c.l.b16 %v1059
    %v1124 = vunpack.c.l.b16 %v1060
    %v1125 = vunpack.c.l.b16 %v1061
    %v1126 = vunpack.c.l.b16 %v1062
    %v1127 = vunpack.c.l.b16 %v1063
    %v1128 = vpack.c.b16 %v1097, %v1096
    %v1129 = vpack.c.b16 %v1099, %v1098
    %v1130 = vpack.c.b16 %v1101, %v1100
    %v1131 = vpack.c.b16 %v1103, %v1102
    %v1132 = vpack.c.b16 %v1105, %v1104
    %v1133 = vpack.c.b16 %v1107, %v1106
    %v1134 = vpack.c.b16 %v1109, %v1108
    %v1135 = vpack.c.b16 %v1111, %v1110
    %v1136 = vpack.c.b16 %v1113, %v1112
    %v1137 = vpack.c.b16 %v1115, %v1114
    %v1138 = vpack.c.b16 %v1117, %v1116
    %v1139 = vpack.c.b16 %v1119, %v1118
    %v1140 = vpack.c.b16 %v1121, %v1120
    %v1141 = vpack.c.b16 %v1123, %v1122
    %v1142 = vpack.c.b16 %v1125, %v1124
    %v1143 = vpack.c.b16 %v1127, %v1126
    %1160 = vmatpush.bf16.msra.mxu0 %v1135
    %1161 = vmatpush.bf16.msra.mxu0 %v1134
    %1162 = vmatpush.bf16.msra.mxu0 %v1133
    %1163 = vmatpush.bf16.msra.mxu0 %v1132
    %1164 = vmatpush.bf16.msra.mxu0 %v1131
    %1165 = vmatpush.bf16.msra.mxu0 %v1130
    %1166 = vmatpush.bf16.msra.mxu0 %v1129
    %1167 = vmatpush.bf16.msra.mxu0 %v1128
    %1168 = vmatmul.bf16.gmra.mxu0 %v1016
    %v1169 = vpop.f32.mrf.mxu0
    %v1170 = vadd.f32 0.0, %v1169
    %v1171 = vpop.f32.mrf.mxu0
    %v1172 = vadd.f32 0.0, %v1171
    %1173 = vmatmul.bf16.gmra.mxu0 %v1018
    %v1174 = vpop.f32.mrf.mxu0
    %v1175 = vadd.f32 0.0, %v1174
    %v1176 = vpop.f32.mrf.mxu0
    %v1177 = vadd.f32 0.0, %v1176
    %1178 = vmatmul.bf16.gmra.mxu0 %v1020
    %v1179 = vpop.f32.mrf.mxu0
    %v1180 = vadd.f32 0.0, %v1179
    %v1181 = vpop.f32.mrf.mxu0
    %v1182 = vadd.f32 0.0, %v1181
    %1183 = vmatmul.bf16.gmra.mxu0 %v1022
    %v1184 = vpop.f32.mrf.mxu0
    %v1185 = vadd.f32 0.0, %v1184
    %v1186 = vpop.f32.mrf.mxu0
    %v1187 = vadd.f32 0.0, %v1186
    %1188 = vmatmul.bf16.gmra.mxu0 %v1024
    %v1189 = vpop.f32.mrf.mxu0
    %v1190 = vadd.f32 0.0, %v1189
    %v1191 = vpop.f32.mrf.mxu0
    %v1192 = vadd.f32 0.0, %v1191
    %1193 = vmatmul.bf16.gmra.mxu0 %v1026
    %v1194 = vpop.f32.mrf.mxu0
    %v1195 = vadd.f32 0.0, %v1194
    %v1196 = vpop.f32.mrf.mxu0
    %v1197 = vadd.f32 0.0, %v1196
    %1198 = vmatmul.bf16.gmra.mxu0 %v1028
    %v1199 = vpop.f32.mrf.mxu0
    %v1200 = vadd.f32 0.0, %v1199
    %v1201 = vpop.f32.mrf.mxu0
    %v1202 = vadd.f32 0.0, %v1201
    %1203 = vmatmul.bf16.gmra.mxu0 %v1030
    %v1204 = vpop.f32.mrf.mxu0
    %v1205 = vadd.f32 0.0, %v1204
    %v1206 = vpop.f32.mrf.mxu0
    %v1207 = vadd.f32 0.0, %v1206
    %1208 = vdwg.mxu0
    %1209 = vmatpush.bf16.msra.mxu0 %v1143
    %1210 = vmatpush.bf16.msra.mxu0 %v1142
    %1211 = vmatpush.bf16.msra.mxu0 %v1141
    %1212 = vmatpush.bf16.msra.mxu0 %v1140
    %1213 = vmatpush.bf16.msra.mxu0 %v1139
    %1214 = vmatpush.bf16.msra.mxu0 %v1138
    %1215 = vmatpush.bf16.msra.mxu0 %v1137
    %1216 = vmatpush.bf16.msra.mxu0 %v1136
    %1217 = vmatmul.bf16.gmra.mxu0 %v1017
    %v1218 = vpop.f32.mrf.mxu0
    %v1219 = vadd.f32 %v1170, %v1218
    %v1220 = vpop.f32.mrf.mxu0
    %v1221 = vadd.f32 %v1172, %v1220
    %1222 = vmatmul.bf16.gmra.mxu0 %v1019
    %v1223 = vpop.f32.mrf.mxu0
    %v1224 = vadd.f32 %v1175, %v1223
    %v1225 = vpop.f32.mrf.mxu0
    %v1226 = vadd.f32 %v1177, %v1225
    %1227 = vmatmul.bf16.gmra.mxu0 %v1021
    %v1228 = vpop.f32.mrf.mxu0
    %v1229 = vadd.f32 %v1180, %v1228
    %v1230 = vpop.f32.mrf.mxu0
    %v1231 = vadd.f32 %v1182, %v1230
    %1232 = vmatmul.bf16.gmra.mxu0 %v1023
    %v1233 = vpop.f32.mrf.mxu0
    %v1234 = vadd.f32 %v1185, %v1233
    %v1235 = vpop.f32.mrf.mxu0
    %v1236 = vadd.f32 %v1187, %v1235
    %1237 = vmatmul.bf16.gmra.mxu0 %v1025
    %v1238 = vpop.f32.mrf.mxu0
    %v1239 = vadd.f32 %v1190, %v1238
    %v1240 = vpop.f32.mrf.mxu0
    %v1241 = vadd.f32 %v1192, %v1240
    %1242 = vmatmul.bf16.gmra.mxu0 %v1027
    %v1243 = vpop.f32.mrf.mxu0
    %v1244 = vadd.f32 %v1195, %v1243
    %v1245 = vpop.f32.mrf.mxu0
    %v1246 = vadd.f32 %v1197, %v1245
    %1247 = vmatmul.bf16.gmra.mxu0 %v1029
    %v1248 = vpop.f32.mrf.mxu0
    %v1249 = vadd.f32 %v1200, %v1248
    %v1250 = vpop.f32.mrf.mxu0
    %v1251 = vadd.f32 %v1202, %v1250
    %1252 = vmatmul.bf16.gmra.mxu0 %v1031
    %v1253 = vpop.f32.mrf.mxu0
    %v1254 = vadd.f32 %v1205, %v1253
    %v1255 = vpop.f32.mrf.mxu0
    %v1256 = vadd.f32 %v1207, %v1255
    %1257 = vdwg.mxu0
    %v1258 = vpack.c.bf16 %v1219, %v1219
    %v1259 = vpack.c.bf16 %v1221, %v1221
    %v1260 = vpack.c.bf16 %v1224, %v1224
    %v1261 = vpack.c.bf16 %v1226, %v1226
    %v1262 = vpack.c.bf16 %v1229, %v1229
    %v1263 = vpack.c.bf16 %v1231, %v1231
    %v1264 = vpack.c.bf16 %v1234, %v1234
    %v1265 = vpack.c.bf16 %v1236, %v1236
    %v1266 = vpack.c.bf16 %v1239, %v1239
    %v1267 = vpack.c.bf16 %v1241, %v1241
    %v1268 = vpack.c.bf16 %v1244, %v1244
    %v1269 = vpack.c.bf16 %v1246, %v1246
    %v1270 = vpack.c.bf16 %v1249, %v1249
    %v1271 = vpack.c.bf16 %v1251, %v1251
    %v1272 = vpack.c.bf16 %v1254, %v1254
    %v1273 = vpack.c.bf16 %v1256, %v1256
    %1274 = vst [vmem:[%s5] sm:$0xf] %v1258
    %1275 = vst [vmem:[%s5 + $0x4] sm:$0xf] %v1259
    %1276 = vst [vmem:[%s5 + $0x8] sm:$0xf] %v1260
    %1277 = vst [vmem:[%s5 + $0xc] sm:$0xf] %v1261
    %1278 = vst [vmem:[%s5 + $0x10] sm:$0xf] %v1262
    %1279 = vst [vmem:[%s5 + $0x14] sm:$0xf] %v1263
    %1280 = vst [vmem:[%s5 + $0x18] sm:$0xf] %v1264
    %1281 = vst [vmem:[%s5 + $0x1c] sm:$0xf] %v1265
    %1282 = vst [vmem:[%s5 + $0x20] sm:$0xf] %v1266
    %1283 = vst [vmem:[%s5 + $0x24] sm:$0xf] %v1267
    %1284 = vst [vmem:[%s5 + $0x28] sm:$0xf] %v1268
    %1285 = vst [vmem:[%s5 + $0x2c] sm:$0xf] %v1269
    %1286 = vst [vmem:[%s5 + $0x30] sm:$0xf] %v1270
    %1287 = vst [vmem:[%s5 + $0x34] sm:$0xf] %v1271
    %1288 = vst [vmem:[%s5 + $0x38] sm:$0xf] %v1272
    %1289 = vst [vmem:[%s5 + $0x3c] sm:$0xf] %v1273
    // Predicated region
    $region30: #{d_forward.3} parent=1 // pred_check
      _
    $region31: #{d_forward.3} parent=1 // pred_check_branch
      %1291 = sbr.rel (0) target = $region33
    $region32: #{d_forward.3} parent=1 // pred_region
      _
    $region33: #{d_forward.3} parent=1 // pred_fallthru
      _
    // Predicated region
    $region34: #{d_forward.3} parent=1 // pred_check
      _
    $region35: #{d_forward.3} parent=1 // pred_check_branch
      %1293 = sbr.rel (0) target = $region37
    $region36: #{d_forward.3} parent=1 // pred_region
      _
    $region37: #{d_forward.3} parent=1 // pred_fallthru
      _
    %1294 = vsyncpa [#allocation3], 1
    %1295 = vsyncpa [#allocation5], 1

</llo_original>
